<compile_context>
chip_gen: v7x
topology: tpu7x:2x2x1
jax: 0.10.0
libtpu: 0.0.40
codegen_flags: <defaults>
</compile_context>

<pallas_src>
import math
from functools import partial

import jax
import jax.numpy as jnp
from jax import lax
from jax.experimental import pallas as pl
from jax.experimental.pallas import tpu as pltpu

STAGE_NUM = 3


# ----------------------------------------------------------------------------- kernel
def emau_kernel(x_ref, w1t_ref, b1_ref, mu0_ref, w2t_ref, b2_ref,
                out_ref, mu_out_ref, *, stage_num):
    # x_ref      : (N, Cp) f32   input pixels for this batch element (also the residual)
    # w1t_ref    : (Cp, Cp) bf16 conv1 weight, pre-transposed to [c_in, c_out]
    # b1_ref     : (1, Cp) f32   conv1 bias
    # mu0_ref    : (Cp, K) bf16  initial bases
    # w2t_ref    : (Cp, Cp) bf16 conv2 weight (BN-scale folded), pre-transposed [c_in, c_out]
    # b2_ref     : (1, Cp) f32   folded BN shift (acts as conv2 bias)
    # out_ref    : (N, Cp) f32
    # mu_out_ref : (Cp, K) f32
    x_b = x_ref[...].astype(jnp.bfloat16)                                  # conv1 operand only

    # conv1 (1x1, with bias): x1 = x @ w1^T + b1  (weight pre-transposed in wrapper)
    x1 = jnp.dot(x_b, w1t_ref[...], preferred_element_type=jnp.float32) + b1_ref[...]   # (N, Cp) f32

    # bf16 copies of the loop-invariant slab, both orientations, hoisted out of the EM loop
    x1_b = x1.astype(jnp.bfloat16)                                         # (N, Cp)
    x1t_b = x1.T.astype(jnp.bfloat16)                                      # (Cp, N)

    mu_b = mu0_ref[...]                                                    # (Cp, K) bf16
    mu = None
    z = None
    for _ in range(stage_num):                                             # EM iterations (unrolled)
        # z = softmax_K(x1 @ mu)
        s = jnp.dot(x1_b, mu_b, preferred_element_type=jnp.float32)        # (N, K) f32
        s = s - jnp.max(s, axis=-1, keepdims=True)
        e = jnp.exp(s)
        z = e * pl.reciprocal(jnp.sum(e, axis=-1, keepdims=True), approx=True)
        # column-normalize over pixels N
        z_ = z * pl.reciprocal(1e-6 + jnp.sum(z, axis=0, keepdims=True), approx=True)
        # mu = x1^T z_   (uses the hoisted transposed slab, no per-iteration big transpose)
        mu = jnp.dot(x1t_b, z_.astype(jnp.bfloat16),
                     preferred_element_type=jnp.float32)                   # (Cp, K) f32
        # l2-normalize over the channel dim
        mu = mu * lax.rsqrt(jnp.sum(mu * mu, axis=0, keepdims=True) + 1e-12)
        mu_b = mu.astype(jnp.bfloat16)

    # reconstruction: (N, Cp) = z @ mu^T, then ReLU
    x_rec = lax.dot_general(z.astype(jnp.bfloat16), mu_b,
                            dimension_numbers=(((1,), (1,)), ((), ())),
                            preferred_element_type=jnp.float32)            # (N, Cp)
    x_rec = jnp.maximum(x_rec, 0.0)

    # conv2 (1x1, no bias) with BN affine folded into the weight; b2 carries BN shift.
    # TODO(synk): PyTorch BN in training mode would use batch statistics; here we use the
    # freshly-initialized running stats (inference-mode affine), as in the original kernel.
    x2 = jnp.dot(x_rec.astype(jnp.bfloat16), w2t_ref[...],
                 preferred_element_type=jnp.float32) + b2_ref[...]         # (N, Cp)

    # residual add (fresh f32 read of x -> short live range) + ReLU
    out_ref[...] = jnp.maximum(x2 + x_ref[...], 0.0)
    mu_out_ref[...] = mu


# ----------------------------------------------------------------------------- wrapper
def _round_up(v, m):
    return (v + m - 1) // m * m


def emau_forward(x_nchw, w1, b1, mu0, w2, bn_scale, bn_shift, *, stage_num=STAGE_NUM):
    B, C, H, W = x_nchw.shape
    N = H * W
    K = mu0.shape[-1]
    Cp = _round_up(C, 128)          # lane-dense channel axis
    pad = Cp - C

    # NCHW -> (B, N, C) pixel-major, zero-pad channels (padding is exactly preserved as zeros
    # through conv1 / EM / conv2 / residual, so it never perturbs the real channels).
    x_bnc = jnp.transpose(x_nchw.reshape(B, C, N), (0, 2, 1)).astype(jnp.float32)
    x_bnc = jnp.pad(x_bnc, ((0, 0), (0, 0), (0, pad)))

    # conv1: pad + pre-transpose to [c_in, c_out], bf16 MXU operand; bias stays f32.
    w1t = jnp.transpose(jnp.pad(w1.astype(jnp.float32),
                                ((0, pad), (0, pad)))).astype(jnp.bfloat16)
    b1_2d = jnp.pad(b1.astype(jnp.float32), ((0, pad),)).reshape(1, Cp)

    # conv2 + BN folded: w2f[co, ci] = w2[co, ci] * bn_scale[co]; bias = bn_shift.
    w2f = w2.astype(jnp.float32) * bn_scale.astype(jnp.float32)[:, None]
    w2t = jnp.transpose(jnp.pad(w2f, ((0, pad), (0, pad)))).astype(jnp.bfloat16)
    b2_2d = jnp.pad(bn_shift.astype(jnp.float32), ((0, pad),)).reshape(1, Cp)

    mu0_p = jnp.pad(mu0.astype(jnp.float32), ((0, pad), (0, 0))).astype(jnp.bfloat16)

    const2d = lambda shape: pl.BlockSpec(shape, lambda b: (0, 0))

    out_bnc, mu_out = pl.pallas_call(
        partial(emau_kernel, stage_num=stage_num),
        out_shape=(
            jax.ShapeDtypeStruct((B, N, Cp), jnp.float32),
            jax.ShapeDtypeStruct((B, Cp, K), jnp.float32),
        ),
        grid_spec=pltpu.PrefetchScalarGridSpec(
            num_scalar_prefetch=0,
            grid=(B,),
            in_specs=[
                pl.BlockSpec((None, N, Cp), lambda b: (b, 0, 0)),   # x (per-batch slab)
                const2d((Cp, Cp)),                                   # conv1 weight^T (bf16)
                const2d((1, Cp)),                                    # conv1 bias
                const2d((Cp, K)),                                    # mu0 (bf16)
                const2d((Cp, Cp)),                                   # conv2(+BN) weight^T (bf16)
                const2d((1, Cp)),                                    # folded BN shift
            ],
            out_specs=[
                pl.BlockSpec((None, N, Cp), lambda b: (b, 0, 0)),    # out
                pl.BlockSpec((None, Cp, K), lambda b: (b, 0, 0)),    # mu
            ],
        ),
        compiler_params=pltpu.CompilerParams(dimension_semantics=("parallel",)),
    )(x_bnc, w1t, b1_2d, mu0_p, w2t, b2_2d)

    # strip channel padding, (B, N, C) -> NCHW
    out_nchw = jnp.transpose(out_bnc[..., :C], (0, 2, 1)).reshape(B, C, H, W)
    return out_nchw, mu_out[:, :C, :]


# ----------------------------------------------------------------------------- pure-JAX reference
def emau_ref(x, w1, b1, mu0, w2, scale, shift, stage_num=STAGE_NUM):
    B, C, H, W = x.shape
    idn = x
    ein = partial(jnp.einsum, precision=lax.Precision.HIGHEST)
    x1 = ein('bchw,oc->bohw', x, w1) + b1[None, :, None, None]
    xf = x1.reshape(B, C, H * W)
    mu = jnp.broadcast_to(mu0[None], (B,) + mu0.shape)
    z = None
    for _ in range(stage_num):
        z = ein('bcn,bck->bnk', xf, mu)
        z = jax.nn.softmax(z, axis=2)
        z_ = z / (1e-6 + z.sum(axis=1, keepdims=True))
        mu = ein('bcn,bnk->bck', xf, z_)
        mu = mu / (1e-6 + jnp.linalg.norm(mu, axis=1, keepdims=True))
    xr = ein('bck,bnk->bcn', mu, z).reshape(B, C, H, W)
    xr = jax.nn.relu(xr)
    x2 = ein('bchw,oc->bohw', xr, w2)
    x2 = x2 * scale[None, :, None, None] + shift[None, :, None, None]
    return jax.nn.relu(x2 + idn), mu


# ----------------------------------------------------------------------------- main
if __name__ == "__main__":
    B, C, H, W, K = 2, 64, 8, 8, 16

    key = jax.random.PRNGKey(0)
    k_mu, k_w1, k_b1, k_w2, k_x = jax.random.split(key, 5)

    # mu: normal(0, sqrt(2/k)), l2-normalized over channel dim
    mu0 = jax.random.normal(k_mu, (C, K), jnp.float32) * math.sqrt(2.0 / K)
    mu0 = mu0 / (1e-6 + jnp.linalg.norm(mu0, axis=0, keepdims=True))

    # conv1: 1x1, normal(0, sqrt(2/(1*1*c_out))), bias = PyTorch default uniform
    w1 = jax.random.normal(k_w1, (C, C), jnp.float32) * math.sqrt(2.0 / C)
    b1 = jax.random.uniform(k_b1, (C,), jnp.float32,
                            minval=-1.0 / math.sqrt(C), maxval=1.0 / math.sqrt(C))

    # conv2: 1x1, no bias, normal(0, sqrt(2/c_out))
    w2 = jax.random.normal(k_w2, (C, C), jnp.float32) * math.sqrt(2.0 / C)

    # BatchNorm2d init: gamma=1, beta=0, running_mean=0, running_var=1, eps=1e-5
    bn_eps = 1e-5
    bn_scale = jnp.ones((C,), jnp.float32) / jnp.sqrt(1.0 + bn_eps)
    bn_shift = jnp.zeros((C,), jnp.float32)

    x = jax.random.normal(k_x, (B, C, H, W), jnp.float32)

    out, mu = emau_forward(x, w1, b1, mu0, w2, bn_scale, bn_shift)
    out = jax.block_until_ready(out)
    mu = jax.block_until_ready(mu)

    out_ref, mu_ref = emau_ref(x, w1, b1, mu0, w2, bn_scale, bn_shift)

    assert out.shape == (B, C, H, W) and mu.shape == (B, C, K)
    assert bool(jnp.all(jnp.isfinite(out))) and bool(jnp.all(jnp.isfinite(mu)))
    # bf16 MXU operands through 3 EM iterations -> tolerance loosened vs. the f32 reference
    assert jnp.allclose(out, out_ref, atol=3e-2, rtol=3e-2), \
        f"out mismatch, max err {jnp.max(jnp.abs(out - out_ref))}"
    assert jnp.allclose(mu, mu_ref, atol=3e-2, rtol=3e-2), \
        f"mu mismatch, max err {jnp.max(jnp.abs(mu - mu_ref))}"

    print("KERNEL_OK")
</pallas_src>

<mosaic_0001>
module attributes {stable_mosaic.version = 11 : i64} {
  func.func @emau_kernel(%arg0: i32, %arg1: memref<1x64x128xf32, #tpu.memory_space<vmem>>, %arg2: memref<128x128xbf16, #tpu.memory_space<vmem>>, %arg3: memref<1x128xf32, #tpu.memory_space<vmem>>, %arg4: memref<128x16xbf16, #tpu.memory_space<vmem>>, %arg5: memref<128x128xbf16, #tpu.memory_space<vmem>>, %arg6: memref<1x128xf32, #tpu.memory_space<vmem>>, %arg7: memref<1x64x128xf32, #tpu.memory_space<vmem>>, %arg8: memref<1x128x16xf32, #tpu.memory_space<vmem>>) attributes {dimension_semantics = [#tpu.dimension_semantics<parallel>], iteration_bounds = array<i64: 2>, scalar_prefetch = 0 : i64, scratch_operands = 0 : i64, tpu.core_type = #tpu.core_type<tc>, window_params = [{transform_indices = @transform_0, window_bounds = array<i64: 1, 64, 128>}, {pipeline_mode = #tpu.pipeline_mode<synchronous>, transform_indices = @transform_1, window_bounds = array<i64: 128, 128>}, {pipeline_mode = #tpu.pipeline_mode<synchronous>, transform_indices = @transform_2, window_bounds = array<i64: 1, 128>}, {pipeline_mode = #tpu.pipeline_mode<synchronous>, transform_indices = @transform_3, window_bounds = array<i64: 128, 16>}, {pipeline_mode = #tpu.pipeline_mode<synchronous>, transform_indices = @transform_4, window_bounds = array<i64: 128, 128>}, {pipeline_mode = #tpu.pipeline_mode<synchronous>, transform_indices = @transform_5, window_bounds = array<i64: 1, 128>}, {transform_indices = @transform_6, window_bounds = array<i64: 1, 64, 128>}, {transform_indices = @transform_7, window_bounds = array<i64: 1, 128, 16>}]} {
    %c0 = arith.constant 0 : index
    %c0_0 = arith.constant 0 : index
    %c0_1 = arith.constant 0 : index
    %0 = vector.load %arg1[%c0, %c0_0, %c0_1] : memref<1x64x128xf32, #tpu.memory_space<vmem>>, vector<1x64x128xf32>
    %1 = vector.shape_cast %0 : vector<1x64x128xf32> to vector<64x128xf32>
    %2 = arith.truncf %1 : vector<64x128xf32> to vector<64x128xbf16>
    %c0_2 = arith.constant 0 : index
    %c0_3 = arith.constant 0 : index
    %3 = vector.load %arg2[%c0_2, %c0_3] : memref<128x128xbf16, #tpu.memory_space<vmem>>, vector<128x128xbf16>
    %cst = arith.constant dense<0.000000e+00> : vector<64x128xf32>
    %4 = tpu.matmul %2, %3, %cst {dimension_numbers = #tpu.dot_dimension_numbers<[1], [0], [0], [1], [0, 0, 1, 1], [], []>} : vector<64x128xbf16>, vector<128x128xbf16>, vector<64x128xf32> -> vector<64x128xf32>
    %c0_4 = arith.constant 0 : index
    %c0_5 = arith.constant 0 : index
    %5 = vector.load %arg3[%c0_4, %c0_5] : memref<1x128xf32, #tpu.memory_space<vmem>>, vector<1x128xf32>
    %6 = vector.broadcast %5 : vector<1x128xf32> to vector<64x128xf32>
    %7 = arith.addf %4, %6 : vector<64x128xf32>
    %8 = arith.truncf %7 : vector<64x128xf32> to vector<64x128xbf16>
    %9 = tpu.transpose %7, [1, 0] : vector<64x128xf32> -> vector<128x64xf32>
    %10 = arith.truncf %9 : vector<128x64xf32> to vector<128x64xbf16>
    %c0_6 = arith.constant 0 : index
    %c0_7 = arith.constant 0 : index
    %11 = vector.load %arg4[%c0_6, %c0_7] : memref<128x16xbf16, #tpu.memory_space<vmem>>, vector<128x16xbf16>
    %cst_8 = arith.constant dense<0.000000e+00> : vector<64x16xf32>
    %12 = tpu.matmul %8, %11, %cst_8 {dimension_numbers = #tpu.dot_dimension_numbers<[1], [0], [0], [1], [0, 0, 1, 1], [], []>} : vector<64x128xbf16>, vector<128x16xbf16>, vector<64x16xf32> -> vector<64x16xf32>
    %cst_9 = arith.constant dense<0xFF800000> : vector<64xf32>
    %13 = vector.multi_reduction <maximumf>, %12, %cst_9 [1] : vector<64x16xf32> to vector<64xf32>
    %14 = vector.shape_cast %13 : vector<64xf32> to vector<64x1xf32>
    %15 = vector.broadcast %14 : vector<64x1xf32> to vector<64x16xf32>
    %16 = arith.subf %12, %15 : vector<64x16xf32>
    %17 = math.exp %16 : vector<64x16xf32>
    %cst_10 = arith.constant dense<0.000000e+00> : vector<64xf32>
    %18 = vector.multi_reduction <add>, %17, %cst_10 [1] : vector<64x16xf32> to vector<64xf32>
    %19 = vector.shape_cast %18 : vector<64xf32> to vector<64x1xf32>
    %20 = tpu.reciprocal %19 {approx = true} : vector<64x1xf32> -> vector<64x1xf32>
    %21 = vector.broadcast %20 : vector<64x1xf32> to vector<64x16xf32>
    %22 = arith.mulf %17, %21 : vector<64x16xf32>
    %cst_11 = arith.constant dense<0.000000e+00> : vector<16xf32>
    %23 = vector.multi_reduction <add>, %22, %cst_11 [0] : vector<64x16xf32> to vector<16xf32>
    %24 = vector.shape_cast %23 : vector<16xf32> to vector<1x16xf32>
    %cst_12 = arith.constant 9.99999997E-7 : f32
    %25 = vector.broadcast %cst_12 : f32 to vector<1x16xf32>
    %26 = arith.addf %25, %24 : vector<1x16xf32>
    %27 = tpu.reciprocal %26 {approx = true} : vector<1x16xf32> -> vector<1x16xf32>
    %28 = vector.broadcast %27 : vector<1x16xf32> to vector<64x16xf32>
    %29 = arith.mulf %22, %28 : vector<64x16xf32>
    %30 = arith.truncf %29 : vector<64x16xf32> to vector<64x16xbf16>
    %cst_13 = arith.constant dense<0.000000e+00> : vector<128x16xf32>
    %31 = tpu.matmul %10, %30, %cst_13 {dimension_numbers = #tpu.dot_dimension_numbers<[1], [0], [0], [1], [0, 0, 1, 1], [], []>} : vector<128x64xbf16>, vector<64x16xbf16>, vector<128x16xf32> -> vector<128x16xf32>
    %32 = arith.mulf %31, %31 : vector<128x16xf32>
    %cst_14 = arith.constant dense<0.000000e+00> : vector<16xf32>
    %33 = vector.multi_reduction <add>, %32, %cst_14 [0] : vector<128x16xf32> to vector<16xf32>
    %34 = vector.shape_cast %33 : vector<16xf32> to vector<1x16xf32>
    %cst_15 = arith.constant 9.99999996E-13 : f32
    %35 = vector.broadcast %cst_15 : f32 to vector<1x16xf32>
    %36 = arith.addf %34, %35 : vector<1x16xf32>
    %37 = math.rsqrt %36 : vector<1x16xf32>
    %38 = vector.broadcast %37 : vector<1x16xf32> to vector<128x16xf32>
    %39 = arith.mulf %31, %38 : vector<128x16xf32>
    %40 = arith.truncf %39 : vector<128x16xf32> to vector<128x16xbf16>
    %cst_16 = arith.constant dense<0.000000e+00> : vector<64x16xf32>
    %41 = tpu.matmul %8, %40, %cst_16 {dimension_numbers = #tpu.dot_dimension_numbers<[1], [0], [0], [1], [0, 0, 1, 1], [], []>} : vector<64x128xbf16>, vector<128x16xbf16>, vector<64x16xf32> -> vector<64x16xf32>
    %cst_17 = arith.constant dense<0xFF800000> : vector<64xf32>
    %42 = vector.multi_reduction <maximumf>, %41, %cst_17 [1] : vector<64x16xf32> to vector<64xf32>
    %43 = vector.shape_cast %42 : vector<64xf32> to vector<64x1xf32>
    %44 = vector.broadcast %43 : vector<64x1xf32> to vector<64x16xf32>
    %45 = arith.subf %41, %44 : vector<64x16xf32>
    %46 = math.exp %45 : vector<64x16xf32>
    %cst_18 = arith.constant dense<0.000000e+00> : vector<64xf32>
    %47 = vector.multi_reduction <add>, %46, %cst_18 [1] : vector<64x16xf32> to vector<64xf32>
    %48 = vector.shape_cast %47 : vector<64xf32> to vector<64x1xf32>
    %49 = tpu.reciprocal %48 {approx = true} : vector<64x1xf32> -> vector<64x1xf32>
    %50 = vector.broadcast %49 : vector<64x1xf32> to vector<64x16xf32>
    %51 = arith.mulf %46, %50 : vector<64x16xf32>
    %cst_19 = arith.constant dense<0.000000e+00> : vector<16xf32>
    %52 = vector.multi_reduction <add>, %51, %cst_19 [0] : vector<64x16xf32> to vector<16xf32>
    %53 = vector.shape_cast %52 : vector<16xf32> to vector<1x16xf32>
    %cst_20 = arith.constant 9.99999997E-7 : f32
    %54 = vector.broadcast %cst_20 : f32 to vector<1x16xf32>
    %55 = arith.addf %54, %53 : vector<1x16xf32>
    %56 = tpu.reciprocal %55 {approx = true} : vector<1x16xf32> -> vector<1x16xf32>
    %57 = vector.broadcast %56 : vector<1x16xf32> to vector<64x16xf32>
    %58 = arith.mulf %51, %57 : vector<64x16xf32>
    %59 = arith.truncf %58 : vector<64x16xf32> to vector<64x16xbf16>
    %cst_21 = arith.constant dense<0.000000e+00> : vector<128x16xf32>
    %60 = tpu.matmul %10, %59, %cst_21 {dimension_numbers = #tpu.dot_dimension_numbers<[1], [0], [0], [1], [0, 0, 1, 1], [], []>} : vector<128x64xbf16>, vector<64x16xbf16>, vector<128x16xf32> -> vector<128x16xf32>
    %61 = arith.mulf %60, %60 : vector<128x16xf32>
    %cst_22 = arith.constant dense<0.000000e+00> : vector<16xf32>
    %62 = vector.multi_reduction <add>, %61, %cst_22 [0] : vector<128x16xf32> to vector<16xf32>
    %63 = vector.shape_cast %62 : vector<16xf32> to vector<1x16xf32>
    %cst_23 = arith.constant 9.99999996E-13 : f32
    %64 = vector.broadcast %cst_23 : f32 to vector<1x16xf32>
    %65 = arith.addf %63, %64 : vector<1x16xf32>
    %66 = math.rsqrt %65 : vector<1x16xf32>
    %67 = vector.broadcast %66 : vector<1x16xf32> to vector<128x16xf32>
    %68 = arith.mulf %60, %67 : vector<128x16xf32>
    %69 = arith.truncf %68 : vector<128x16xf32> to vector<128x16xbf16>
    %cst_24 = arith.constant dense<0.000000e+00> : vector<64x16xf32>
    %70 = tpu.matmul %8, %69, %cst_24 {dimension_numbers = #tpu.dot_dimension_numbers<[1], [0], [0], [1], [0, 0, 1, 1], [], []>} : vector<64x128xbf16>, vector<128x16xbf16>, vector<64x16xf32> -> vector<64x16xf32>
    %cst_25 = arith.constant dense<0xFF800000> : vector<64xf32>
    %71 = vector.multi_reduction <maximumf>, %70, %cst_25 [1] : vector<64x16xf32> to vector<64xf32>
    %72 = vector.shape_cast %71 : vector<64xf32> to vector<64x1xf32>
    %73 = vector.broadcast %72 : vector<64x1xf32> to vector<64x16xf32>
    %74 = arith.subf %70, %73 : vector<64x16xf32>
    %75 = math.exp %74 : vector<64x16xf32>
    %cst_26 = arith.constant dense<0.000000e+00> : vector<64xf32>
    %76 = vector.multi_reduction <add>, %75, %cst_26 [1] : vector<64x16xf32> to vector<64xf32>
    %77 = vector.shape_cast %76 : vector<64xf32> to vector<64x1xf32>
    %78 = tpu.reciprocal %77 {approx = true} : vector<64x1xf32> -> vector<64x1xf32>
    %79 = vector.broadcast %78 : vector<64x1xf32> to vector<64x16xf32>
    %80 = arith.mulf %75, %79 : vector<64x16xf32>
    %cst_27 = arith.constant dense<0.000000e+00> : vector<16xf32>
    %81 = vector.multi_reduction <add>, %80, %cst_27 [0] : vector<64x16xf32> to vector<16xf32>
    %82 = vector.shape_cast %81 : vector<16xf32> to vector<1x16xf32>
    %cst_28 = arith.constant 9.99999997E-7 : f32
    %83 = vector.broadcast %cst_28 : f32 to vector<1x16xf32>
    %84 = arith.addf %83, %82 : vector<1x16xf32>
    %85 = tpu.reciprocal %84 {approx = true} : vector<1x16xf32> -> vector<1x16xf32>
    %86 = vector.broadcast %85 : vector<1x16xf32> to vector<64x16xf32>
    %87 = arith.mulf %80, %86 : vector<64x16xf32>
    %88 = arith.truncf %87 : vector<64x16xf32> to vector<64x16xbf16>
    %cst_29 = arith.constant dense<0.000000e+00> : vector<128x16xf32>
    %89 = tpu.matmul %10, %88, %cst_29 {dimension_numbers = #tpu.dot_dimension_numbers<[1], [0], [0], [1], [0, 0, 1, 1], [], []>} : vector<128x64xbf16>, vector<64x16xbf16>, vector<128x16xf32> -> vector<128x16xf32>
    %90 = arith.mulf %89, %89 : vector<128x16xf32>
    %cst_30 = arith.constant dense<0.000000e+00> : vector<16xf32>
    %91 = vector.multi_reduction <add>, %90, %cst_30 [0] : vector<128x16xf32> to vector<16xf32>
    %92 = vector.shape_cast %91 : vector<16xf32> to vector<1x16xf32>
    %cst_31 = arith.constant 9.99999996E-13 : f32
    %93 = vector.broadcast %cst_31 : f32 to vector<1x16xf32>
    %94 = arith.addf %92, %93 : vector<1x16xf32>
    %95 = math.rsqrt %94 : vector<1x16xf32>
    %96 = vector.broadcast %95 : vector<1x16xf32> to vector<128x16xf32>
    %97 = arith.mulf %89, %96 : vector<128x16xf32>
    %98 = arith.truncf %97 : vector<128x16xf32> to vector<128x16xbf16>
    %99 = arith.truncf %80 : vector<64x16xf32> to vector<64x16xbf16>
    %cst_32 = arith.constant dense<0.000000e+00> : vector<64x128xf32>
    %100 = tpu.matmul %99, %98, %cst_32 {dimension_numbers = #tpu.dot_dimension_numbers<[1], [1], [0], [0], [0, 0, 1, 0], [], []>} : vector<64x16xbf16>, vector<128x16xbf16>, vector<64x128xf32> -> vector<64x128xf32>
    %cst_33 = arith.constant 0.000000e+00 : f32
    %101 = vector.broadcast %cst_33 : f32 to vector<64x128xf32>
    %102 = arith.maximumf %100, %101 : vector<64x128xf32>
    %103 = arith.truncf %102 : vector<64x128xf32> to vector<64x128xbf16>
    %c0_34 = arith.constant 0 : index
    %c0_35 = arith.constant 0 : index
    %104 = vector.load %arg5[%c0_34, %c0_35] : memref<128x128xbf16, #tpu.memory_space<vmem>>, vector<128x128xbf16>
    %cst_36 = arith.constant dense<0.000000e+00> : vector<64x128xf32>
    %105 = tpu.matmul %103, %104, %cst_36 {dimension_numbers = #tpu.dot_dimension_numbers<[1], [0], [0], [1], [0, 0, 1, 1], [], []>} : vector<64x128xbf16>, vector<128x128xbf16>, vector<64x128xf32> -> vector<64x128xf32>
    %c0_37 = arith.constant 0 : index
    %c0_38 = arith.constant 0 : index
    %106 = vector.load %arg6[%c0_37, %c0_38] : memref<1x128xf32, #tpu.memory_space<vmem>>, vector<1x128xf32>
    %107 = vector.broadcast %106 : vector<1x128xf32> to vector<64x128xf32>
    %108 = arith.addf %105, %107 : vector<64x128xf32>
    %c0_39 = arith.constant 0 : index
    %c0_40 = arith.constant 0 : index
    %c0_41 = arith.constant 0 : index
    %109 = vector.load %arg1[%c0_39, %c0_40, %c0_41] : memref<1x64x128xf32, #tpu.memory_space<vmem>>, vector<1x64x128xf32>
    %110 = vector.shape_cast %109 : vector<1x64x128xf32> to vector<64x128xf32>
    %111 = arith.addf %108, %110 : vector<64x128xf32>
    %cst_42 = arith.constant 0.000000e+00 : f32
    %112 = vector.broadcast %cst_42 : f32 to vector<64x128xf32>
    %113 = arith.maximumf %111, %112 : vector<64x128xf32>
    %c0_43 = arith.constant 0 : index
    %c0_44 = arith.constant 0 : index
    %c0_45 = arith.constant 0 : index
    %114 = vector.load %arg7[%c0_43, %c0_44, %c0_45] : memref<1x64x128xf32, #tpu.memory_space<vmem>>, vector<1x64x128xf32>
    %115 = vector.shape_cast %114 : vector<1x64x128xf32> to vector<64x128xf32>
    %116 = vector.shape_cast %113 : vector<64x128xf32> to vector<1x64x128xf32>
    tpu.vector_store %arg7[%c0_43, %c0_44, %c0_45], %116 {strides = array<i32>} : memref<1x64x128xf32, #tpu.memory_space<vmem>>, vector<1x64x128xf32>,
    %c0_46 = arith.constant 0 : index
    %c0_47 = arith.constant 0 : index
    %c0_48 = arith.constant 0 : index
    %117 = vector.load %arg8[%c0_46, %c0_47, %c0_48] : memref<1x128x16xf32, #tpu.memory_space<vmem>>, vector<1x128x16xf32>
    %118 = vector.shape_cast %117 : vector<1x128x16xf32> to vector<128x16xf32>
    %119 = vector.shape_cast %97 : vector<128x16xf32> to vector<1x128x16xf32>
    tpu.vector_store %arg8[%c0_46, %c0_47, %c0_48], %119 {strides = array<i32>} : memref<1x128x16xf32, #tpu.memory_space<vmem>>, vector<1x128x16xf32>,
    return
  }
  func.func @transform_0(%arg0: i32) -> (i32, i32, i32) {
    %c0_i32 = arith.constant 0 : i32
    %c0_i32_0 = arith.constant 0 : i32
    %c0_i32_1 = arith.constant 0 : i32
    return %arg0, %c0_i32, %c0_i32_0 : i32, i32, i32
  }
  func.func @transform_1(%arg0: i32) -> (i32, i32) {
    %c0_i32 = arith.constant 0 : i32
    %c0_i32_0 = arith.constant 0 : i32
    %c0_i32_1 = arith.constant 0 : i32
    return %c0_i32, %c0_i32_0 : i32, i32
  }
  func.func @transform_2(%arg0: i32) -> (i32, i32) {
    %c0_i32 = arith.constant 0 : i32
    %c0_i32_0 = arith.constant 0 : i32
    %c0_i32_1 = arith.constant 0 : i32
    return %c0_i32, %c0_i32_0 : i32, i32
  }
  func.func @transform_3(%arg0: i32) -> (i32, i32) {
    %c0_i32 = arith.constant 0 : i32
    %c0_i32_0 = arith.constant 0 : i32
    %c0_i32_1 = arith.constant 0 : i32
    return %c0_i32, %c0_i32_0 : i32, i32
  }
  func.func @transform_4(%arg0: i32) -> (i32, i32) {
    %c0_i32 = arith.constant 0 : i32
    %c0_i32_0 = arith.constant 0 : i32
    %c0_i32_1 = arith.constant 0 : i32
    return %c0_i32, %c0_i32_0 : i32, i32
  }
  func.func @transform_5(%arg0: i32) -> (i32, i32) {
    %c0_i32 = arith.constant 0 : i32
    %c0_i32_0 = arith.constant 0 : i32
    %c0_i32_1 = arith.constant 0 : i32
    return %c0_i32, %c0_i32_0 : i32, i32
  }
  func.func @transform_6(%arg0: i32) -> (i32, i32, i32) {
    %c0_i32 = arith.constant 0 : i32
    %c0_i32_0 = arith.constant 0 : i32
    %c0_i32_1 = arith.constant 0 : i32
    return %arg0, %c0_i32, %c0_i32_0 : i32, i32, i32
  }
  func.func @transform_7(%arg0: i32) -> (i32, i32, i32) {
    %c0_i32 = arith.constant 0 : i32
    %c0_i32_0 = arith.constant 0 : i32
    %c0_i32_1 = arith.constant 0 : i32
    return %arg0, %c0_i32, %c0_i32_0 : i32, i32, i32
  }
}

</mosaic_0001>

<llo_original>
// kernel: tpu_custom_call.1
$region0: #{tpu_custom_call.1}
  #allocation0 [shape = 'u32[]', space=smem, size = 0x4, offset = 0x4, fixed_abs, tag = 'smem constant byte address 0x4 - core index']
  #allocation1 [shape = 'u32[144,128]{1,0:T(1,128)}', space=vmem, size = 0x12000, scoped, tag = 'internal scratch']
  %s0 = inlined_call_operand.hbm [shape: f32[2,64,128], index: 0, kind: input, shape index: {}]
  %s1 = inlined_call_operand.vmem [shape: bf16[128,128], index: 1, kind: input, shape index: {}]
  %s2 = inlined_call_operand.vmem [shape: f32[1,128], index: 2, kind: input, shape index: {}]
  %s3 = inlined_call_operand.vmem [shape: bf16[128,16], index: 3, kind: input, shape index: {}]
  %s4 = inlined_call_operand.hbm [shape: bf16[128,128], index: 4, kind: input, shape index: {}]
  %s5 = inlined_call_operand.vmem [shape: f32[1,128], index: 5, kind: input, shape index: {}]
  %s6 = inlined_call_operand.hbm [shape: f32[2,64,128], index: 6, kind: output, shape index: {0}]
  %s7 = inlined_call_operand.vmem [shape: f32[2,128,16], index: 7, kind: output, shape index: {1}]
  %8 = xla_tuple %s6, %s7
  %s9 = sld [smem:[#allocation0]]
  $region73: #{tpu_custom_call.1} parent=0
    _
  %s11 = ssub.s32 1, %s9
  %s12 = scalar_select 0, %s11, %s9
  $region1: #{tpu_custom_call.1} parent=0
    #allocation2 [shape = 'u8[65536]{0}', space=vmem, size = 0x10000, scoped, tag = 'input window, operand 0']
    #allocation3 [shape = 's32[2]{0}', space=sflag, size = 0x8, scoped, tag = 'scoped memory for tpu_custom_call.1']
    #allocation4 [shape = 's32[2]{0}', space=sflag, size = 0x8, scoped, tag = 'scoped memory for tpu_custom_call.1']
    #allocation5 [shape = 'u8[32768]{0}', space=vmem, size = 0x8000, scoped, tag = 'input window, operand 4, single buffered']
    #allocation6 [shape = 's32[1]{0}', space=sflag, size = 0x4, scoped, tag = 'scoped memory for tpu_custom_call.1']
    #allocation7 [shape = 'u8[65536]{0}', space=vmem, size = 0x10000, scoped, tag = 'output window, operand 0']
    %13 = vsyncpa [#allocation3], 0
    %s14 = scalar_lea.sflag [#allocation3], 1
    %15 = vsyncpa %s14, 0
    %16 = vsyncpa [#allocation6], 0
    %17 = vsyncpa [#allocation4], 0
    %s18 = scalar_lea.sflag [#allocation4], 1
    %19 = vsyncpa %s18, 0
    loop: start=0, step=1, limit=4
    $region2: #{tpu_custom_call.1} parent=1 // loop_pre_header
      _
    $region3: #{tpu_custom_call.1} parent=1 // loop_header
      %s21 = sphi 0, %s25
      %p22 = scmp.ge.s32.totalorder %s21, 4
      %s31 = sphi 0, %s33
      %s34 = sphi 0, %s31
      %s35 = sphi 0, %s34
      %s51 = sphi 0, %s35
      %s55 = sphi 0, %s55
      %s57 = sphi 0, %s55
      %s58 = sphi 0, %s57
      %s72 = sphi 0, %s58
      %s76 = sphi 0, %s76
      %s78 = sphi 0, %s76
      %s79 = sphi 0, %s78
      %s93 = sphi 0, %s79
      %s97 = sphi 0, %s97
      %s99 = sphi 0, %s97
      %s100 = sphi 0, %s99
      %s114 = sphi 0, %s100
      %s118 = sphi 0, %s118
      %s120 = sphi 0, %s118
      %s121 = sphi 0, %s120
      %s135 = sphi 0, %s121
      %s139 = sphi 0, %s139
      %s141 = sphi 0, %s139
      %s142 = sphi 0, %s141
      %s156 = sphi 0, %s142
      %s162 = sphi 0, %s164
      %s165 = sphi 0, %s162
      %s166 = sphi 0, %s165
      %s182 = sphi 0, %s166
      %s188 = sphi 0, %s190
      %s191 = sphi 0, %s188
      %s192 = sphi 0, %s191
      %s208 = sphi 0, %s192
    $region4: #{tpu_custom_call.1} parent=1 // loop_header_branch
      %24 = sbr.rel (%p22) target = $region8
    $region5: #{tpu_custom_call.1} parent=1 // loop_body
      %s26 = ssub.s32 %s21, 1
      %s27 = ssub.s32 %s21, 2
      %s28 = sadd.s32 %s21, 1
      %s29 = ssub.s32 %s21, %s28
      %p30 = scmp.eq.s32.totalorder %s29, 0
      %s32 = sadd.s32 %s31, 1
      %s33 = scalar_select %p30, %s31, %s32
      %p36 = pneg %p30
      %p37 = scmp.eq.s32.totalorder %s21, 1
      %p38 = por %p36, %p37
      %p39 = scmp.ne.s32.totalorder %s31, %s34
      %p40 = scmp.eq.s32.totalorder %s21, 0
      %p41 = por %p39, %p40
      %p42 = scmp.ne.s32.totalorder %s31, %s34
      %p43 = scmp.eq.s32.totalorder %s26, 1
      %p44 = por %p42, %p43
      %p45 = scmp.ne.s32.totalorder %s34, %s35
      %p46 = scmp.eq.s32.totalorder %s26, 0
      %p47 = por %p45, %p46
      %p48 = scmp.ne.s32.totalorder %s34, %s35
      %p49 = scmp.eq.s32.totalorder %s27, 1
      %p50 = por %p48, %p49
      %p52 = scmp.ne.s32.totalorder %s35, %s51
      %p53 = scmp.eq.s32.totalorder %s27, 0
      %p54 = por %p52, %p53
      %s56 = sadd.s32 %s55, 1
      %p59 = scmp.eq.s32.totalorder %s21, 1
      %p60 = scmp.ne.s32.totalorder %s55, %s57
      %p61 = scmp.eq.s32.totalorder %s21, 0
      %p62 = por %p60, %p61
      %p63 = scmp.ne.s32.totalorder %s55, %s57
      %p64 = scmp.eq.s32.totalorder %s26, 1
      %p65 = por %p63, %p64
      %p66 = scmp.ne.s32.totalorder %s57, %s58
      %p67 = scmp.eq.s32.totalorder %s26, 0
      %p68 = por %p66, %p67
      %p69 = scmp.ne.s32.totalorder %s57, %s58
      %p70 = scmp.eq.s32.totalorder %s27, 1
      %p71 = por %p69, %p70
      %p73 = scmp.ne.s32.totalorder %s58, %s72
      %p74 = scmp.eq.s32.totalorder %s27, 0
      %p75 = por %p73, %p74
      %s77 = sadd.s32 %s76, 1
      %p80 = scmp.eq.s32.totalorder %s21, 1
      %p81 = scmp.ne.s32.totalorder %s76, %s78
      %p82 = scmp.eq.s32.totalorder %s21, 0
      %p83 = por %p81, %p82
      %p84 = scmp.ne.s32.totalorder %s76, %s78
      %p85 = scmp.eq.s32.totalorder %s26, 1
      %p86 = por %p84, %p85
      %p87 = scmp.ne.s32.totalorder %s78, %s79
      %p88 = scmp.eq.s32.totalorder %s26, 0
      %p89 = por %p87, %p88
      %p90 = scmp.ne.s32.totalorder %s78, %s79
      %p91 = scmp.eq.s32.totalorder %s27, 1
      %p92 = por %p90, %p91
      %p94 = scmp.ne.s32.totalorder %s79, %s93
      %p95 = scmp.eq.s32.totalorder %s27, 0
      %p96 = por %p94, %p95
      %s98 = sadd.s32 %s97, 1
      %p101 = scmp.eq.s32.totalorder %s21, 1
      %p102 = scmp.ne.s32.totalorder %s97, %s99
      %p103 = scmp.eq.s32.totalorder %s21, 0
      %p104 = por %p102, %p103
      %p105 = scmp.ne.s32.totalorder %s97, %s99
      %p106 = scmp.eq.s32.totalorder %s26, 1
      %p107 = por %p105, %p106
      %p108 = scmp.ne.s32.totalorder %s99, %s100
      %p109 = scmp.eq.s32.totalorder %s26, 0
      %p110 = por %p108, %p109
      %p111 = scmp.ne.s32.totalorder %s99, %s100
      %p112 = scmp.eq.s32.totalorder %s27, 1
      %p113 = por %p111, %p112
      %p115 = scmp.ne.s32.totalorder %s100, %s114
      %p116 = scmp.eq.s32.totalorder %s27, 0
      %p117 = por %p115, %p116
      %s119 = sadd.s32 %s118, 1
      %p122 = scmp.eq.s32.totalorder %s21, 1
      %p123 = scmp.ne.s32.totalorder %s118, %s120
      %p124 = scmp.eq.s32.totalorder %s21, 0
      %p125 = por %p123, %p124
      %p126 = scmp.ne.s32.totalorder %s118, %s120
      %p127 = scmp.eq.s32.totalorder %s26, 1
      %p128 = por %p126, %p127
      %p129 = scmp.ne.s32.totalorder %s120, %s121
      %p130 = scmp.eq.s32.totalorder %s26, 0
      %p131 = por %p129, %p130
      %p132 = scmp.ne.s32.totalorder %s120, %s121
      %p133 = scmp.eq.s32.totalorder %s27, 1
      %p134 = por %p132, %p133
      %p136 = scmp.ne.s32.totalorder %s121, %s135
      %p137 = scmp.eq.s32.totalorder %s27, 0
      %p138 = por %p136, %p137
      %s140 = sadd.s32 %s139, 1
      %p143 = scmp.eq.s32.totalorder %s21, 1
      %p144 = scmp.ne.s32.totalorder %s139, %s141
      %p145 = scmp.eq.s32.totalorder %s21, 0
      %p146 = por %p144, %p145
      %p147 = scmp.ne.s32.totalorder %s139, %s141
      %p148 = scmp.eq.s32.totalorder %s26, 1
      %p149 = por %p147, %p148
      %p150 = scmp.ne.s32.totalorder %s141, %s142
      %p151 = scmp.eq.s32.totalorder %s26, 0
      %p152 = por %p150, %p151
      %p153 = scmp.ne.s32.totalorder %s141, %s142
      %p154 = scmp.eq.s32.totalorder %s27, 1
      %p155 = por %p153, %p154
      %p157 = scmp.ne.s32.totalorder %s142, %s156
      %p158 = scmp.eq.s32.totalorder %s27, 0
      %p159 = por %p157, %p158
      %s160 = ssub.s32 %s21, %s28
      %p161 = scmp.eq.s32.totalorder %s160, 0
      %s163 = sadd.s32 %s162, 1
      %s164 = scalar_select %p161, %s162, %s163
      %p167 = pneg %p161
      %p168 = scmp.eq.s32.totalorder %s21, 1
      %p169 = por %p167, %p168
      %p170 = scmp.ne.s32.totalorder %s162, %s165
      %p171 = scmp.eq.s32.totalorder %s21, 0
      %p172 = por %p170, %p171
      %p173 = scmp.ne.s32.totalorder %s162, %s165
      %p174 = scmp.eq.s32.totalorder %s26, 1
      %p175 = por %p173, %p174
      %p176 = scmp.ne.s32.totalorder %s165, %s166
      %p177 = scmp.eq.s32.totalorder %s26, 0
      %p178 = por %p176, %p177
      %p179 = scmp.ne.s32.totalorder %s165, %s166
      %p180 = scmp.eq.s32.totalorder %s27, 1
      %p181 = por %p179, %p180
      %p183 = scmp.ne.s32.totalorder %s166, %s182
      %p184 = scmp.eq.s32.totalorder %s27, 0
      %p185 = por %p183, %p184
      %s186 = ssub.s32 %s21, %s28
      %p187 = scmp.eq.s32.totalorder %s186, 0
      %s189 = sadd.s32 %s188, 1
      %s190 = scalar_select %p187, %s188, %s189
      %p193 = pneg %p187
      %p194 = scmp.eq.s32.totalorder %s21, 1
      %p195 = por %p193, %p194
      %p196 = scmp.ne.s32.totalorder %s188, %s191
      %p197 = scmp.eq.s32.totalorder %s21, 0
      %p198 = por %p196, %p197
      %p199 = scmp.ne.s32.totalorder %s188, %s191
      %p200 = scmp.eq.s32.totalorder %s26, 1
      %p201 = por %p199, %p200
      %p202 = scmp.ne.s32.totalorder %s191, %s192
      %p203 = scmp.eq.s32.totalorder %s26, 0
      %p204 = por %p202, %p203
      %p205 = scmp.ne.s32.totalorder %s191, %s192
      %p206 = scmp.eq.s32.totalorder %s27, 1
      %p207 = por %p205, %p206
      %p209 = scmp.ne.s32.totalorder %s192, %s208
      %p210 = scmp.eq.s32.totalorder %s27, 0
      %p211 = por %p209, %p210
      %p212 = scmp.le.s32.totalorder 1, %s21
      %p213 = scmp.lt.s32.totalorder %s21, 3
      %p214 = pnand %p212, %p213
      %p215 = pneg %p214
      // Predicated region
      $region9: #{tpu_custom_call.1} parent=5 // pred_check
        _
      $region10: #{tpu_custom_call.1} parent=5 // pred_check_branch
        %217 = sbr.rel (%p214) target = $region12
      $region11: #{tpu_custom_call.1} parent=5 // pred_region
        %s218 = ssub.s32 %s21, 1
        // Predicated region
        $region13: #{tpu_custom_call.1} parent=11 // pred_check
          %p219 = pneg %p68
        $region14: #{tpu_custom_call.1} parent=11 // pred_check_branch
          %221 = sbr.rel (%p219) target = $region16
        $region15: #{tpu_custom_call.1} parent=11 // pred_region
          _
        $region16: #{tpu_custom_call.1} parent=11 // pred_fallthru
          _
        // Predicated region
        $region17: #{tpu_custom_call.1} parent=11 // pred_check
          %p222 = pneg %p89
        $region18: #{tpu_custom_call.1} parent=11 // pred_check_branch
          %224 = sbr.rel (%p222) target = $region20
        $region19: #{tpu_custom_call.1} parent=11 // pred_region
          _
        $region20: #{tpu_custom_call.1} parent=11 // pred_fallthru
          _
        // Predicated region
        $region21: #{tpu_custom_call.1} parent=11 // pred_check
          %p225 = pneg %p110
        $region22: #{tpu_custom_call.1} parent=11 // pred_check_branch
          %227 = sbr.rel (%p225) target = $region24
        $region23: #{tpu_custom_call.1} parent=11 // pred_region
          _
        $region24: #{tpu_custom_call.1} parent=11 // pred_fallthru
          _
        // Predicated region
        $region25: #{tpu_custom_call.1} parent=11 // pred_check
          %p228 = pneg %p131
        $region26: #{tpu_custom_call.1} parent=11 // pred_check_branch
          %230 = sbr.rel (%p228) target = $region28
        $region27: #{tpu_custom_call.1} parent=11 // pred_region
          %s232 = ssub.s32 1024, 1024
          %233 = vsyncadd [#allocation6], %s232
          %s234 = sshll.u32 [#allocation5], 4
          %s235 = int_to_ptr.vmem [resolvable:$true] %s234
          %240 = dma.hbm_to_vmem [thread:$0]  %s4, 1024, %s235, [#allocation6], 64, 64, 4
        $region28: #{tpu_custom_call.1} parent=11 // pred_fallthru
          _
        // Predicated region
        $region29: #{tpu_custom_call.1} parent=11 // pred_check
          %p241 = pneg %p152
        $region30: #{tpu_custom_call.1} parent=11 // pred_check_branch
          %243 = sbr.rel (%p241) target = $region32
        $region31: #{tpu_custom_call.1} parent=11 // pred_region
          _
        $region32: #{tpu_custom_call.1} parent=11 // pred_fallthru
          _
      $region12: #{tpu_custom_call.1} parent=5 // pred_fallthru
        _
      %p244 = scmp.lt.s32.totalorder %s21, 2
      // Predicated region
      $region33: #{tpu_custom_call.1} parent=5 // pred_check
        %p245 = pneg %p244
      $region34: #{tpu_custom_call.1} parent=5 // pred_check_branch
        %247 = sbr.rel (%p245) target = $region36
      $region35: #{tpu_custom_call.1} parent=5 // pred_region
        // Predicated region
        $region37: #{tpu_custom_call.1} parent=35 // pred_check
          %p248 = pneg %p41
        $region38: #{tpu_custom_call.1} parent=35 // pred_check_branch
          %250 = sbr.rel (%p248) target = $region40
        $region39: #{tpu_custom_call.1} parent=35 // pred_region
          %s251 = sand.u32 %s31, 1
          %s252 = scalar_lea.sflag [#allocation3], %s251
          %s253 = sand.u32 %s31, 1
          %s254 = smul.addr %s253, 64
          %s255 = scalar_lea.vmem [#allocation2], %s254
          %s257 = ssub.s32 1024, 1024
          %258 = vsyncadd %s252, %s257
          %s259 = smul.addr %s21, 8
          %s260 = smul.addr %s259, 128
          %s261 = scalar_lea.hbm %s0, %s260
          %s262 = sshll.u32 %s255, 4
          %s263 = int_to_ptr.vmem [resolvable:$true] %s262
          %268 = dma.hbm_to_vmem [thread:$0]  %s261, 1024, %s263, %s252, 128, 128, 8
        $region40: #{tpu_custom_call.1} parent=35 // pred_fallthru
          _
      $region36: #{tpu_custom_call.1} parent=5 // pred_fallthru
        _
      %p269 = scmp.le.s32.totalorder 1, %s21
      %p270 = scmp.lt.s32.totalorder %s21, 3
      %p271 = pnand %p269, %p270
      %p272 = pneg %p271
      // Predicated region
      $region41: #{tpu_custom_call.1} parent=5 // pred_check
        _
      $region42: #{tpu_custom_call.1} parent=5 // pred_check_branch
        %274 = sbr.rel (%p271) target = $region44
      $region43: #{tpu_custom_call.1} parent=5 // pred_region
        %s275 = ssub.s32 %s21, 1
        %s276 = sand.u32 %s34, 1
        %s277 = scalar_lea.sflag [#allocation3], %s276
        %s278 = sand.u32 %s34, 1
        %s279 = smul.addr %s278, 64
        %s280 = scalar_lea.vmem [#allocation2], %s279
        // Predicated region
        $region45: #{tpu_custom_call.1} parent=43 // pred_check
          %p281 = pneg %p47
        $region46: #{tpu_custom_call.1} parent=43 // pred_check_branch
          %283 = sbr.rel (%p281) target = $region48
        $region47: #{tpu_custom_call.1} parent=43 // pred_region
          %284 = dma.done %s277, 1024
        $region48: #{tpu_custom_call.1} parent=43 // pred_fallthru
          _
        // Predicated region
        $region49: #{tpu_custom_call.1} parent=43 // pred_check
          %p285 = pneg %p131
        $region50: #{tpu_custom_call.1} parent=43 // pred_check_branch
          %287 = sbr.rel (%p285) target = $region52
        $region51: #{tpu_custom_call.1} parent=43 // pred_region
          %288 = dma.done [#allocation6], 1024
        $region52: #{tpu_custom_call.1} parent=43 // pred_fallthru
          _
        %s289 = sand.u32 %s34, 1
        %s290 = scalar_lea.sflag [#allocation3], %s289
        %s291 = sand.u32 %s34, 1
        %s292 = smul.addr %s291, 64
        %s293 = scalar_lea.vmem [#allocation2], %s292
        %p294 = pneg %p47
        %p295 = pneg %p44
        %p296 = pneg %p68
        %p297 = pneg %p65
        %p298 = pneg %p89
        %p299 = pneg %p86
        %p300 = pneg %p110
        %p301 = pneg %p107
        %p302 = pneg %p131
        %p303 = pneg %p128
        %p304 = pneg %p152
        %p305 = pneg %p149
        %p306 = pneg %p178
        %p307 = pneg %p175
        %s308 = sand.u32 %s165, 1
        %s309 = scalar_lea.sflag [#allocation4], %s308
        %s310 = sand.u32 %s165, 1
        %s311 = smul.addr %s310, 64
        %s312 = scalar_lea.vmem [#allocation7], %s311
        %p313 = pneg %p204
        %p314 = pneg %p201
        %p315 = scmp.lt.s32.totalorder %s26, 1
        %s316 = scalar_select %p315, %s26, 1
        %s317 = smul.addr %s316, 16
        %s318 = smul.addr %s317, 8
        %s319 = scalar_lea.vmem %s7, %s318
        %p320 = scmp.lt.s32.totalorder %s26, 1
        %s321 = scalar_select %p320, %s26, 1
        %s322 = smul.addr %s321, 16
        %s323 = smul.addr %s322, 8
        %s324 = scalar_lea.vmem %s7, %s323
        %v326 = vld [vmem:[%s280] sm:$0xff]
        %v327 = vld [vmem:[%s280 + $0x8] sm:$0xff]
        %v328 = vld [vmem:[%s280 + $0x10] sm:$0xff]
        %v329 = vld [vmem:[%s280 + $0x18] sm:$0xff]
        %v330 = vld [vmem:[%s280 + $0x20] sm:$0xff]
        %v331 = vld [vmem:[%s280 + $0x28] sm:$0xff]
        %v332 = vld [vmem:[%s280 + $0x30] sm:$0xff]
        %v333 = vld [vmem:[%s280 + $0x38] sm:$0xff]
        %v334 = vpack.c.bf16 %v327, %v326
        %v335 = vpack.c.bf16 %v329, %v328
        %v336 = vpack.c.bf16 %v331, %v330
        %v337 = vpack.c.bf16 %v333, %v332
        %v338 = vld [vmem:[%s1] sm:$0xf]
        %v339 = vld [vmem:[%s1 + $0x4] sm:$0xf]
        %v340 = vld [vmem:[%s1 + $0x8] sm:$0xf]
        %v341 = vld [vmem:[%s1 + $0xc] sm:$0xf]
        %v342 = vld [vmem:[%s1 + $0x10] sm:$0xf]
        %v343 = vld [vmem:[%s1 + $0x14] sm:$0xf]
        %v344 = vld [vmem:[%s1 + $0x18] sm:$0xf]
        %v345 = vld [vmem:[%s1 + $0x1c] sm:$0xf]
        %v346 = vld [vmem:[%s1 + $0x20] sm:$0xf]
        %v347 = vld [vmem:[%s1 + $0x24] sm:$0xf]
        %v348 = vld [vmem:[%s1 + $0x28] sm:$0xf]
        %v349 = vld [vmem:[%s1 + $0x2c] sm:$0xf]
        %v350 = vld [vmem:[%s1 + $0x30] sm:$0xf]
        %v351 = vld [vmem:[%s1 + $0x34] sm:$0xf]
        %v352 = vld [vmem:[%s1 + $0x38] sm:$0xf]
        %v353 = vld [vmem:[%s1 + $0x3c] sm:$0xf]
        %v354 = vld [vmem:[%s2] sm:$0x1]
        %v356 = vlaneseq
        %v357 = vshrl.u32 %v356, 7
        %v358 = vsub.s32 0, %v357
        %v359 = vrot.slane %v354, %v358
        %v377 = vunpack.c.l.b16 %v338
        %v378 = vunpack.c.l.b16 %v339
        %v379 = vunpack.c.l.b16 %v340
        %v380 = vunpack.c.l.b16 %v341
        %v381 = vunpack.c.l.b16 %v342
        %v382 = vunpack.c.l.b16 %v343
        %v383 = vunpack.c.l.b16 %v344
        %v384 = vunpack.c.l.b16 %v345
        %v385 = vunpack.c.l.b16 %v346
        %v386 = vunpack.c.l.b16 %v347
        %v387 = vunpack.c.l.b16 %v348
        %v388 = vunpack.c.l.b16 %v349
        %v389 = vunpack.c.l.b16 %v350
        %v390 = vunpack.c.l.b16 %v351
        %v391 = vunpack.c.l.b16 %v352
        %v392 = vunpack.c.l.b16 %v353
        %v393 = vpack.c.b16 %v378, %v377
        %v394 = vpack.c.b16 %v380, %v379
        %v395 = vpack.c.b16 %v382, %v381
        %v396 = vpack.c.b16 %v384, %v383
        %v397 = vpack.c.b16 %v386, %v385
        %v398 = vpack.c.b16 %v388, %v387
        %v399 = vpack.c.b16 %v390, %v389
        %v400 = vpack.c.b16 %v392, %v391
        %409 = vmatprep.subr.bf16.mxu0 0
        %410 = vmatpush1.bf16.msra.mxu0 %v393
        %411 = vmatprep.subr.bf16.mxu0 0
        %412 = vmatpush1.bf16.msra.mxu0 %v394
        %413 = vmatprep.subr.bf16.mxu0 0
        %414 = vmatpush1.bf16.msra.mxu0 %v395
        %415 = vmatprep.subr.bf16.mxu0 0
        %416 = vmatpush1.bf16.msra.mxu0 %v396
        %417 = vmatprep.subr.bf16.mxu0 0
        %418 = vmatpush1.bf16.msra.mxu0 %v397
        %419 = vmatprep.subr.bf16.mxu0 0
        %420 = vmatpush1.bf16.msra.mxu0 %v398
        %421 = vmatprep.subr.bf16.mxu0 0
        %422 = vmatpush1.bf16.msra.mxu0 %v399
        %423 = vmatprep.subr.bf16.mxu0 0
        %424 = vmatpush1.bf16.msra.mxu0 %v400
        %425 = vmatprep.subr.bf16.mxu0 0
        %426 = vmatpush1.bf16.msra.mxu0 0
        %427 = vmatprep.subr.bf16.mxu0 0
        %428 = vmatpush1.bf16.msra.mxu0 0
        %429 = vmatprep.subr.bf16.mxu0 0
        %430 = vmatpush1.bf16.msra.mxu0 0
        %431 = vmatprep.subr.bf16.mxu0 0
        %432 = vmatpush1.bf16.msra.mxu0 0
        %433 = vmatprep.subr.bf16.mxu0 0
        %434 = vmatpush1.bf16.msra.mxu0 0
        %435 = vmatprep.subr.bf16.mxu0 0
        %436 = vmatpush1.bf16.msra.mxu0 0
        %437 = vmatprep.subr.bf16.mxu0 0
        %438 = vmatpush1.bf16.msra.mxu0 0
        %439 = vmatprep.subr.bf16.mxu0 0
        %440 = vmatpush1.bf16.msra.mxu0 0
        %441 = vmatprep.mubr.bf16.mxu0 0
        %442 = vmatmul.mubr.bf16.gmra.mrb[0].mxu0 %v334
        %v443 = vpop.f32.mrb[0].mxu0
        %v444 = vadd.f32 %v359, %v443
        %v445 = vpop.f32.mrb[0].mxu0
        %v446 = vpop.f32.mrb[0].mxu0
        %v447 = vadd.f32 %v359, %v446
        %v448 = vpop.f32.mrb[0].mxu0
        %449 = vmatprep.mubr.bf16.mxu0 0
        %450 = vmatmul.mubr.bf16.gmra.mrb[0].mxu0 %v335
        %v451 = vpop.f32.mrb[0].mxu0
        %v452 = vadd.f32 %v359, %v451
        %v453 = vpop.f32.mrb[0].mxu0
        %v454 = vpop.f32.mrb[0].mxu0
        %v455 = vadd.f32 %v359, %v454
        %v456 = vpop.f32.mrb[0].mxu0
        %457 = vmatprep.mubr.bf16.mxu0 0
        %458 = vmatmul.mubr.bf16.gmra.mrb[0].mxu0 %v336
        %v459 = vpop.f32.mrb[0].mxu0
        %v460 = vadd.f32 %v359, %v459
        %v461 = vpop.f32.mrb[0].mxu0
        %v462 = vpop.f32.mrb[0].mxu0
        %v463 = vadd.f32 %v359, %v462
        %v464 = vpop.f32.mrb[0].mxu0
        %465 = vmatprep.mubr.bf16.mxu0 0
        %466 = vmatmul.mubr.bf16.gmra.mrb[0].mxu0 %v337
        %v467 = vpop.f32.mrb[0].mxu0
        %v468 = vadd.f32 %v359, %v467
        %v469 = vpop.f32.mrb[0].mxu0
        %v470 = vpop.f32.mrb[0].mxu0
        %v471 = vadd.f32 %v359, %v470
        %v472 = vpop.f32.mrb[0].mxu0
        %473 = vdwg.mxu0
        %v474 = vpack.c.bf16 %v447, %v444
        %v475 = vpack.c.bf16 %v455, %v452
        %v476 = vpack.c.bf16 %v463, %v460
        %v477 = vpack.c.bf16 %v471, %v468
        %478 = vxpose.xlu0.b32.start [1/16] %v444, 128
        %479 = vxpose.xlu0.b32.cont [2/16] %v447, 128
        %480 = vxpose.xlu0.b32.cont [3/16] %v452, 128
        %481 = vxpose.xlu0.b32.cont [4/16] %v455, 128
        %482 = vxpose.xlu0.b32.cont [5/16] %v460, 128
        %483 = vxpose.xlu0.b32.cont [6/16] %v463, 128
        %484 = vxpose.xlu0.b32.cont [7/16] %v468, 128
        %485 = vxpose.xlu0.b32.cont [8/16] %v471, 128
        %486 = vxpose.xlu0.b32.cont [9/16] 0.0, 128
        %487 = vxpose.xlu0.b32.cont [10/16] 0.0, 128
        %488 = vxpose.xlu0.b32.cont [11/16] 0.0, 128
        %489 = vxpose.xlu0.b32.cont [12/16] 0.0, 128
        %490 = vxpose.xlu0.b32.cont [13/16] 0.0, 128
        %491 = vxpose.xlu0.b32.cont [14/16] 0.0, 128
        %492 = vxpose.xlu0.b32.cont [15/16] 0.0, 128
        %493 = vxpose.xlu0.b32.end [16/16] 0.0, 128
        %v494 = vpop.trf.xlu0
        %v495 = vpop.trf.xlu0
        %v496 = vpop.trf.xlu0
        %v497 = vpop.trf.xlu0
        %v498 = vpop.trf.xlu0
        %v499 = vpop.trf.xlu0
        %v500 = vpop.trf.xlu0
        %v501 = vpop.trf.xlu0
        %v502 = vpop.trf.xlu0
        %v503 = vpop.trf.xlu0
        %v504 = vpop.trf.xlu0
        %v505 = vpop.trf.xlu0
        %v506 = vpop.trf.xlu0
        %v507 = vpop.trf.xlu0
        %v508 = vpop.trf.xlu0
        %v509 = vpop.trf.xlu0
        %v510 = vpack.c.bf16 %v495, %v494
        %v511 = vpack.c.bf16 %v497, %v496
        %v512 = vpack.c.bf16 %v499, %v498
        %v513 = vpack.c.bf16 %v501, %v500
        %v514 = vpack.c.bf16 %v503, %v502
        %v515 = vpack.c.bf16 %v505, %v504
        %v516 = vpack.c.bf16 %v507, %v506
        %v517 = vpack.c.bf16 %v509, %v508
        %v518 = vld [vmem:[%s3] sm:$0xf]
        %v519 = vld [vmem:[%s3 + $0x4] sm:$0xf]
        %v520 = vld [vmem:[%s3 + $0x8] sm:$0xf]
        %v521 = vld [vmem:[%s3 + $0xc] sm:$0xf]
        %v522 = vld [vmem:[%s3 + $0x10] sm:$0xf]
        %v523 = vld [vmem:[%s3 + $0x14] sm:$0xf]
        %v524 = vld [vmem:[%s3 + $0x18] sm:$0xf]
        %v525 = vld [vmem:[%s3 + $0x1c] sm:$0xf]
        %v526 = vld [vmem:[%s3 + $0x20] sm:$0xf]
        %v527 = vld [vmem:[%s3 + $0x24] sm:$0xf]
        %v528 = vld [vmem:[%s3 + $0x28] sm:$0xf]
        %v529 = vld [vmem:[%s3 + $0x2c] sm:$0xf]
        %v530 = vld [vmem:[%s3 + $0x30] sm:$0xf]
        %v531 = vld [vmem:[%s3 + $0x34] sm:$0xf]
        %v532 = vld [vmem:[%s3 + $0x38] sm:$0xf]
        %v533 = vld [vmem:[%s3 + $0x3c] sm:$0xf]
        %v550 = vunpack.c.l.b16 %v518
        %v551 = vunpack.c.l.b16 %v519
        %v552 = vunpack.c.l.b16 %v520
        %v553 = vunpack.c.l.b16 %v521
        %v554 = vunpack.c.l.b16 %v522
        %v555 = vunpack.c.l.b16 %v523
        %v556 = vunpack.c.l.b16 %v524
        %v557 = vunpack.c.l.b16 %v525
        %v558 = vunpack.c.l.b16 %v526
        %v559 = vunpack.c.l.b16 %v527
        %v560 = vunpack.c.l.b16 %v528
        %v561 = vunpack.c.l.b16 %v529
        %v562 = vunpack.c.l.b16 %v530
        %v563 = vunpack.c.l.b16 %v531
        %v564 = vunpack.c.l.b16 %v532
        %v565 = vunpack.c.l.b16 %v533
        %v566 = vpack.c.b16 %v551, %v550
        %v567 = vpack.c.b16 %v553, %v552
        %v568 = vpack.c.b16 %v555, %v554
        %v569 = vpack.c.b16 %v557, %v556
        %v570 = vpack.c.b16 %v559, %v558
        %v571 = vpack.c.b16 %v561, %v560
        %v572 = vpack.c.b16 %v563, %v562
        %v573 = vpack.c.b16 %v565, %v564
        %582 = vmatprep.subr.bf16.mxu0 0
        %583 = vmatpush1.bf16.msra.mxu0 %v566
        %584 = vmatprep.subr.bf16.mxu0 0
        %585 = vmatpush1.bf16.msra.mxu0 %v567
        %586 = vmatprep.subr.bf16.mxu0 0
        %587 = vmatpush1.bf16.msra.mxu0 %v568
        %588 = vmatprep.subr.bf16.mxu0 0
        %589 = vmatpush1.bf16.msra.mxu0 %v569
        %590 = vmatprep.subr.bf16.mxu0 0
        %591 = vmatpush1.bf16.msra.mxu0 %v570
        %592 = vmatprep.subr.bf16.mxu0 0
        %593 = vmatpush1.bf16.msra.mxu0 %v571
        %594 = vmatprep.subr.bf16.mxu0 0
        %595 = vmatpush1.bf16.msra.mxu0 %v572
        %596 = vmatprep.subr.bf16.mxu0 0
        %597 = vmatpush1.bf16.msra.mxu0 %v573
        %598 = vmatprep.subr.bf16.mxu0 0
        %599 = vmatpush1.bf16.msra.mxu0 0
        %600 = vmatprep.subr.bf16.mxu0 0
        %601 = vmatpush1.bf16.msra.mxu0 0
        %602 = vmatprep.subr.bf16.mxu0 0
        %603 = vmatpush1.bf16.msra.mxu0 0
        %604 = vmatprep.subr.bf16.mxu0 0
        %605 = vmatpush1.bf16.msra.mxu0 0
        %606 = vmatprep.subr.bf16.mxu0 0
        %607 = vmatpush1.bf16.msra.mxu0 0
        %608 = vmatprep.subr.bf16.mxu0 0
        %609 = vmatpush1.bf16.msra.mxu0 0
        %610 = vmatprep.subr.bf16.mxu0 0
        %611 = vmatpush1.bf16.msra.mxu0 0
        %612 = vmatprep.subr.bf16.mxu0 0
        %613 = vmatpush1.bf16.msra.mxu0 0
        %614 = vmatprep.mubr.bf16.mxu0 0
        %615 = vmatmul.mubr.bf16.gmra.mrb[0].mxu0 %v474
        %v616 = vpop.f32.mrb[0].mxu0
        %v617 = vadd.f32 0.0, %v616
        %v618 = vpop.f32.mrb[0].mxu0
        %v619 = vpop.f32.mrb[0].mxu0
        %v620 = vadd.f32 0.0, %v619
        %v621 = vpop.f32.mrb[0].mxu0
        %622 = vmatprep.mubr.bf16.mxu0 0
        %623 = vmatmul.mubr.bf16.gmra.mrb[0].mxu0 %v475
        %v624 = vpop.f32.mrb[0].mxu0
        %v625 = vadd.f32 0.0, %v624
        %v626 = vpop.f32.mrb[0].mxu0
        %v627 = vpop.f32.mrb[0].mxu0
        %v628 = vadd.f32 0.0, %v627
        %v629 = vpop.f32.mrb[0].mxu0
        %630 = vmatprep.mubr.bf16.mxu0 0
        %631 = vmatmul.mubr.bf16.gmra.mrb[0].mxu0 %v476
        %v632 = vpop.f32.mrb[0].mxu0
        %v633 = vadd.f32 0.0, %v632
        %v634 = vpop.f32.mrb[0].mxu0
        %v635 = vpop.f32.mrb[0].mxu0
        %v636 = vadd.f32 0.0, %v635
        %v637 = vpop.f32.mrb[0].mxu0
        %638 = vmatprep.mubr.bf16.mxu0 0
        %639 = vmatmul.mubr.bf16.gmra.mrb[0].mxu0 %v477
        %v640 = vpop.f32.mrb[0].mxu0
        %v641 = vadd.f32 0.0, %v640
        %v642 = vpop.f32.mrb[0].mxu0
        %v643 = vpop.f32.mrb[0].mxu0
        %v644 = vadd.f32 0.0, %v643
        %v645 = vpop.f32.mrb[0].mxu0
        %646 = vdwg.mxu0
        %vm647 = vcmask 130048
        %v648 = vsel %vm647, %v617, -inf
        %649 = vmax.xlane.f32.xlu0 %v648
        %v650 = vpop.xlane.xlu0 %649
        %v651 = vsel %vm647, %v620, -inf
        %652 = vmax.xlane.f32.xlu0 %v651
        %v653 = vpop.xlane.xlu0 %652
        %v654 = vsel %vm647, %v625, -inf
        %655 = vmax.xlane.f32.xlu0 %v654
        %v656 = vpop.xlane.xlu0 %655
        %v657 = vsel %vm647, %v628, -inf
        %658 = vmax.xlane.f32.xlu0 %v657
        %v659 = vpop.xlane.xlu0 %658
        %v660 = vsel %vm647, %v633, -inf
        %661 = vmax.xlane.f32.xlu0 %v660
        %v662 = vpop.xlane.xlu0 %661
        %v663 = vsel %vm647, %v636, -inf
        %664 = vmax.xlane.f32.xlu0 %v663
        %v665 = vpop.xlane.xlu0 %664
        %v666 = vsel %vm647, %v641, -inf
        %667 = vmax.xlane.f32.xlu0 %v666
        %v668 = vpop.xlane.xlu0 %667
        %v669 = vsel %vm647, %v644, -inf
        %670 = vmax.xlane.f32.xlu0 %v669
        %v671 = vpop.xlane.xlu0 %670
        %v672 = vsub.f32 %v617, %v650
        %v673 = vsub.f32 %v620, %v653
        %v674 = vsub.f32 %v625, %v656
        %v675 = vsub.f32 %v628, %v659
        %v676 = vsub.f32 %v633, %v662
        %v677 = vsub.f32 %v636, %v665
        %v678 = vsub.f32 %v641, %v668
        %v679 = vsub.f32 %v644, %v671
        %v680 = vmul.f32 %v672, 1.442695
        %v681 = vpow.pop %v680
        %v682 = vmul.f32 %v673, 1.442695
        %v683 = vpow.pop %v682
        %v684 = vmul.f32 %v674, 1.442695
        %v685 = vpow.pop %v684
        %v686 = vmul.f32 %v675, 1.442695
        %v687 = vpow.pop %v686
        %v688 = vmul.f32 %v676, 1.442695
        %v689 = vpow.pop %v688
        %v690 = vmul.f32 %v677, 1.442695
        %v691 = vpow.pop %v690
        %v692 = vmul.f32 %v678, 1.442695
        %v693 = vpow.pop %v692
        %v694 = vmul.f32 %v679, 1.442695
        %v695 = vpow.pop %v694
        %v696 = vsel %vm647, %v681, 0.0
        %697 = vadd.xlane.f32.xlu0 %v696
        %v698 = vpop.xlane.xlu0 %697
        %v699 = vsel %vm647, %v683, 0.0
        %700 = vadd.xlane.f32.xlu0 %v699
        %v701 = vpop.xlane.xlu0 %700
        %v702 = vsel %vm647, %v685, 0.0
        %703 = vadd.xlane.f32.xlu0 %v702
        %v704 = vpop.xlane.xlu0 %703
        %v705 = vsel %vm647, %v687, 0.0
        %706 = vadd.xlane.f32.xlu0 %v705
        %v707 = vpop.xlane.xlu0 %706
        %v708 = vsel %vm647, %v689, 0.0
        %709 = vadd.xlane.f32.xlu0 %v708
        %v710 = vpop.xlane.xlu0 %709
        %v711 = vsel %vm647, %v691, 0.0
        %712 = vadd.xlane.f32.xlu0 %v711
        %v713 = vpop.xlane.xlu0 %712
        %v714 = vsel %vm647, %v693, 0.0
        %715 = vadd.xlane.f32.xlu0 %v714
        %v716 = vpop.xlane.xlu0 %715
        %v717 = vsel %vm647, %v695, 0.0
        %718 = vadd.xlane.f32.xlu0 %v717
        %v719 = vpop.xlane.xlu0 %718
        %v720 = vrcp.pop %v698
        %v721 = vrcp.pop %v701
        %v722 = vrcp.pop %v704
        %v723 = vrcp.pop %v707
        %v724 = vrcp.pop %v710
        %v725 = vrcp.pop %v713
        %v726 = vrcp.pop %v716
        %v727 = vrcp.pop %v719
        %v728 = vmul.f32 %v681, %v720
        %v729 = vmul.f32 %v683, %v721
        %v730 = vmul.f32 %v685, %v722
        %v731 = vmul.f32 %v687, %v723
        %v732 = vmul.f32 %v689, %v724
        %v733 = vmul.f32 %v691, %v725
        %v734 = vmul.f32 %v693, %v726
        %v735 = vmul.f32 %v695, %v727
        %v736 = vsel %vm647, %v728, 0.0
        %v737 = vsel %vm647, %v729, 0.0
        %v738 = vadd.f32 %v736, %v737
        %v739 = vsel %vm647, %v730, 0.0
        %v740 = vadd.f32 %v738, %v739
        %v741 = vsel %vm647, %v731, 0.0
        %v742 = vadd.f32 %v740, %v741
        %v743 = vsel %vm647, %v732, 0.0
        %v744 = vadd.f32 %v742, %v743
        %v745 = vsel %vm647, %v733, 0.0
        %v746 = vadd.f32 %v744, %v745
        %v747 = vsel %vm647, %v734, 0.0
        %v748 = vadd.f32 %v746, %v747
        %v749 = vsel %vm647, %v735, 0.0
        %v750 = vadd.f32 %v748, %v749
        %v751 = vrot.slane %v750, 4
        %v752 = vadd.f32 %v750, %v751
        %v753 = vrot.slane %v752, 2
        %v754 = vadd.f32 %v752, %v753
        %v755 = vrot.slane %v754, 1
        %v756 = vadd.f32 %v754, %v755
        %v757 = vadd.f32 %v756, 1e-06
        %v758 = vrcp.pop %v757
        %v759 = vmul.f32 %v728, %v758
        %v760 = vmul.f32 %v729, %v758
        %v761 = vmul.f32 %v730, %v758
        %v762 = vmul.f32 %v731, %v758
        %v763 = vmul.f32 %v732, %v758
        %v764 = vmul.f32 %v733, %v758
        %v765 = vmul.f32 %v734, %v758
        %v766 = vmul.f32 %v735, %v758
        %v767 = vpack.c.bf16 %v760, %v759
        %v768 = vpack.c.bf16 %v762, %v761
        %v769 = vpack.c.bf16 %v764, %v763
        %v770 = vpack.c.bf16 %v766, %v765
        %vm771 = vcmask 523264
        %v773 = vsel %vm771, %v510, 0
        %v776 = vsel %vm771, %v511, 0
        %v779 = vsel %vm771, %v512, 0
        %v782 = vsel %vm771, %v513, 0
        %v785 = vsel %vm771, %v514, 0
        %v788 = vsel %vm771, %v515, 0
        %v791 = vsel %vm771, %v516, 0
        %v794 = vsel %vm771, %v517, 0
        %796 = vmatprep.subr.bf16.mxu0 0
        %797 = vmatpush1.bf16.msra.mxu0 %v767
        %798 = vmatprep.subr.bf16.mxu0 0
        %799 = vmatpush1.bf16.msra.mxu0 %v768
        %800 = vmatprep.subr.bf16.mxu0 0
        %801 = vmatpush1.bf16.msra.mxu0 %v769
        %802 = vmatprep.subr.bf16.mxu0 0
        %803 = vmatpush1.bf16.msra.mxu0 %v770
        %804 = vmatprep.subr.bf16.mxu0 0
        %805 = vmatpush1.bf16.msra.mxu0 0
        %806 = vmatprep.subr.bf16.mxu0 0
        %807 = vmatpush1.bf16.msra.mxu0 0
        %808 = vmatprep.subr.bf16.mxu0 0
        %809 = vmatpush1.bf16.msra.mxu0 0
        %810 = vmatprep.subr.bf16.mxu0 0
        %811 = vmatpush1.bf16.msra.mxu0 0
        %812 = vmatprep.subr.bf16.mxu0 0
        %813 = vmatpush1.bf16.msra.mxu0 0
        %814 = vmatprep.subr.bf16.mxu0 0
        %815 = vmatpush1.bf16.msra.mxu0 0
        %816 = vmatprep.subr.bf16.mxu0 0
        %817 = vmatpush1.bf16.msra.mxu0 0
        %818 = vmatprep.subr.bf16.mxu0 0
        %819 = vmatpush1.bf16.msra.mxu0 0
        %820 = vmatprep.subr.bf16.mxu0 0
        %821 = vmatpush1.bf16.msra.mxu0 0
        %822 = vmatprep.subr.bf16.mxu0 0
        %823 = vmatpush1.bf16.msra.mxu0 0
        %824 = vmatprep.subr.bf16.mxu0 0
        %825 = vmatpush1.bf16.msra.mxu0 0
        %826 = vmatprep.subr.bf16.mxu0 0
        %827 = vmatpush1.bf16.msra.mxu0 0
        %828 = vmatprep.mubr.bf16.mxu0 0
        %829 = vmatmul.mubr.bf16.gmra.mrb[0].mxu0 %v773
        %v830 = vpop.f32.mrb[0].mxu0
        %v831 = vadd.f32 0.0, %v830
        %v832 = vpop.f32.mrb[0].mxu0
        %v833 = vpop.f32.mrb[0].mxu0
        %v834 = vadd.f32 0.0, %v833
        %v835 = vpop.f32.mrb[0].mxu0
        %836 = vmatprep.mubr.bf16.mxu0 0
        %837 = vmatmul.mubr.bf16.gmra.mrb[0].mxu0 %v776
        %v838 = vpop.f32.mrb[0].mxu0
        %v839 = vadd.f32 0.0, %v838
        %v840 = vpop.f32.mrb[0].mxu0
        %v841 = vpop.f32.mrb[0].mxu0
        %v842 = vadd.f32 0.0, %v841
        %v843 = vpop.f32.mrb[0].mxu0
        %844 = vmatprep.mubr.bf16.mxu0 0
        %845 = vmatmul.mubr.bf16.gmra.mrb[0].mxu0 %v779
        %v846 = vpop.f32.mrb[0].mxu0
        %v847 = vadd.f32 0.0, %v846
        %v848 = vpop.f32.mrb[0].mxu0
        %v849 = vpop.f32.mrb[0].mxu0
        %v850 = vadd.f32 0.0, %v849
        %v851 = vpop.f32.mrb[0].mxu0
        %852 = vmatprep.mubr.bf16.mxu0 0
        %853 = vmatmul.mubr.bf16.gmra.mrb[0].mxu0 %v782
        %v854 = vpop.f32.mrb[0].mxu0
        %v855 = vadd.f32 0.0, %v854
        %v856 = vpop.f32.mrb[0].mxu0
        %v857 = vpop.f32.mrb[0].mxu0
        %v858 = vadd.f32 0.0, %v857
        %v859 = vpop.f32.mrb[0].mxu0
        %860 = vmatprep.mubr.bf16.mxu0 0
        %861 = vmatmul.mubr.bf16.gmra.mrb[0].mxu0 %v785
        %v862 = vpop.f32.mrb[0].mxu0
        %v863 = vadd.f32 0.0, %v862
        %v864 = vpop.f32.mrb[0].mxu0
        %v865 = vpop.f32.mrb[0].mxu0
        %v866 = vadd.f32 0.0, %v865
        %v867 = vpop.f32.mrb[0].mxu0
        %868 = vmatprep.mubr.bf16.mxu0 0
        %869 = vmatmul.mubr.bf16.gmra.mrb[0].mxu0 %v788
        %v870 = vpop.f32.mrb[0].mxu0
        %v871 = vadd.f32 0.0, %v870
        %v872 = vpop.f32.mrb[0].mxu0
        %v873 = vpop.f32.mrb[0].mxu0
        %v874 = vadd.f32 0.0, %v873
        %v875 = vpop.f32.mrb[0].mxu0
        %876 = vmatprep.mubr.bf16.mxu0 0
        %877 = vmatmul.mubr.bf16.gmra.mrb[0].mxu0 %v791
        %v878 = vpop.f32.mrb[0].mxu0
        %v879 = vadd.f32 0.0, %v878
        %v880 = vpop.f32.mrb[0].mxu0
        %v881 = vpop.f32.mrb[0].mxu0
        %v882 = vadd.f32 0.0, %v881
        %v883 = vpop.f32.mrb[0].mxu0
        %884 = vmatprep.mubr.bf16.mxu0 0
        %885 = vmatmul.mubr.bf16.gmra.mrb[0].mxu0 %v794
        %v886 = vpop.f32.mrb[0].mxu0
        %v887 = vadd.f32 0.0, %v886
        %v888 = vpop.f32.mrb[0].mxu0
        %v889 = vpop.f32.mrb[0].mxu0
        %v890 = vadd.f32 0.0, %v889
        %v891 = vpop.f32.mrb[0].mxu0
        %892 = vdwg.mxu0
        %v893 = vmul.f32 %v831, %v831
        %v894 = vmul.f32 %v834, %v834
        %v895 = vmul.f32 %v839, %v839
        %v896 = vmul.f32 %v842, %v842
        %v897 = vmul.f32 %v847, %v847
        %v898 = vmul.f32 %v850, %v850
        %v899 = vmul.f32 %v855, %v855
        %v900 = vmul.f32 %v858, %v858
        %v901 = vmul.f32 %v863, %v863
        %v902 = vmul.f32 %v866, %v866
        %v903 = vmul.f32 %v871, %v871
        %v904 = vmul.f32 %v874, %v874
        %v905 = vmul.f32 %v879, %v879
        %v906 = vmul.f32 %v882, %v882
        %v907 = vmul.f32 %v887, %v887
        %v908 = vmul.f32 %v890, %v890
        %v909 = vsel %vm647, %v893, 0.0
        %v910 = vsel %vm647, %v894, 0.0
        %v911 = vadd.f32 %v909, %v910
        %v912 = vsel %vm647, %v895, 0.0
        %v913 = vadd.f32 %v911, %v912
        %v914 = vsel %vm647, %v896, 0.0
        %v915 = vadd.f32 %v913, %v914
        %v916 = vsel %vm647, %v897, 0.0
        %v917 = vadd.f32 %v915, %v916
        %v918 = vsel %vm647, %v898, 0.0
        %v919 = vadd.f32 %v917, %v918
        %v920 = vsel %vm647, %v899, 0.0
        %v921 = vadd.f32 %v919, %v920
        %v922 = vsel %vm647, %v900, 0.0
        %v923 = vadd.f32 %v921, %v922
        %v924 = vsel %vm647, %v901, 0.0
        %v925 = vadd.f32 %v923, %v924
        %v926 = vsel %vm647, %v902, 0.0
        %v927 = vadd.f32 %v925, %v926
        %v928 = vsel %vm647, %v903, 0.0
        %v929 = vadd.f32 %v927, %v928
        %v930 = vsel %vm647, %v904, 0.0
        %v931 = vadd.f32 %v929, %v930
        %v932 = vsel %vm647, %v905, 0.0
        %v933 = vadd.f32 %v931, %v932
        %v934 = vsel %vm647, %v906, 0.0
        %v935 = vadd.f32 %v933, %v934
        %v936 = vsel %vm647, %v907, 0.0
        %v937 = vadd.f32 %v935, %v936
        %v938 = vsel %vm647, %v908, 0.0
        %v939 = vadd.f32 %v937, %v938
        %v940 = vrot.slane %v939, 4
        %v941 = vadd.f32 %v939, %v940
        %v942 = vrot.slane %v941, 2
        %v943 = vadd.f32 %v941, %v942
        %v944 = vrot.slane %v943, 1
        %v945 = vadd.f32 %v943, %v944
        %v946 = vadd.f32 %v945, 1e-12
        %v947 = vrsqrt.pop %v946
        %v948 = vmul.f32 %v831, %v947
        %v949 = vmul.f32 %v834, %v947
        %v950 = vmul.f32 %v839, %v947
        %v951 = vmul.f32 %v842, %v947
        %v952 = vmul.f32 %v847, %v947
        %v953 = vmul.f32 %v850, %v947
        %v954 = vmul.f32 %v855, %v947
        %v955 = vmul.f32 %v858, %v947
        %v956 = vmul.f32 %v863, %v947
        %v957 = vmul.f32 %v866, %v947
        %v958 = vmul.f32 %v871, %v947
        %v959 = vmul.f32 %v874, %v947
        %v960 = vmul.f32 %v879, %v947
        %v961 = vmul.f32 %v882, %v947
        %v962 = vmul.f32 %v887, %v947
        %v963 = vmul.f32 %v890, %v947
        %v964 = vpack.c.bf16 %v949, %v948
        %v965 = vpack.c.bf16 %v951, %v950
        %v966 = vpack.c.bf16 %v953, %v952
        %v967 = vpack.c.bf16 %v955, %v954
        %v968 = vpack.c.bf16 %v957, %v956
        %v969 = vpack.c.bf16 %v959, %v958
        %v970 = vpack.c.bf16 %v961, %v960
        %v971 = vpack.c.bf16 %v963, %v962
        %972 = vmatprep.subr.bf16.mxu0 0
        %973 = vmatpush1.bf16.msra.mxu0 %v964
        %974 = vmatprep.subr.bf16.mxu0 0
        %975 = vmatpush1.bf16.msra.mxu0 %v965
        %976 = vmatprep.subr.bf16.mxu0 0
        %977 = vmatpush1.bf16.msra.mxu0 %v966
        %978 = vmatprep.subr.bf16.mxu0 0
        %979 = vmatpush1.bf16.msra.mxu0 %v967
        %980 = vmatprep.subr.bf16.mxu0 0
        %981 = vmatpush1.bf16.msra.mxu0 %v968
        %982 = vmatprep.subr.bf16.mxu0 0
        %983 = vmatpush1.bf16.msra.mxu0 %v969
        %984 = vmatprep.subr.bf16.mxu0 0
        %985 = vmatpush1.bf16.msra.mxu0 %v970
        %986 = vmatprep.subr.bf16.mxu0 0
        %987 = vmatpush1.bf16.msra.mxu0 %v971
        %988 = vmatprep.subr.bf16.mxu0 0
        %989 = vmatpush1.bf16.msra.mxu0 0
        %990 = vmatprep.subr.bf16.mxu0 0
        %991 = vmatpush1.bf16.msra.mxu0 0
        %992 = vmatprep.subr.bf16.mxu0 0
        %993 = vmatpush1.bf16.msra.mxu0 0
        %994 = vmatprep.subr.bf16.mxu0 0
        %995 = vmatpush1.bf16.msra.mxu0 0
        %996 = vmatprep.subr.bf16.mxu0 0
        %997 = vmatpush1.bf16.msra.mxu0 0
        %998 = vmatprep.subr.bf16.mxu0 0
        %999 = vmatpush1.bf16.msra.mxu0 0
        %1000 = vmatprep.subr.bf16.mxu0 0
        %1001 = vmatpush1.bf16.msra.mxu0 0
        %1002 = vmatprep.subr.bf16.mxu0 0
        %1003 = vmatpush1.bf16.msra.mxu0 0
        %1004 = vmatprep.mubr.bf16.mxu0 0
        %1005 = vmatmul.mubr.bf16.gmra.mrb[0].mxu0 %v474
        %v1006 = vpop.f32.mrb[0].mxu0
        %v1007 = vadd.f32 0.0, %v1006
        %v1008 = vpop.f32.mrb[0].mxu0
        %v1009 = vpop.f32.mrb[0].mxu0
        %v1010 = vadd.f32 0.0, %v1009
        %v1011 = vpop.f32.mrb[0].mxu0
        %1012 = vmatprep.mubr.bf16.mxu0 0
        %1013 = vmatmul.mubr.bf16.gmra.mrb[0].mxu0 %v475
        %v1014 = vpop.f32.mrb[0].mxu0
        %v1015 = vadd.f32 0.0, %v1014
        %v1016 = vpop.f32.mrb[0].mxu0
        %v1017 = vpop.f32.mrb[0].mxu0
        %v1018 = vadd.f32 0.0, %v1017
        %v1019 = vpop.f32.mrb[0].mxu0
        %1020 = vmatprep.mubr.bf16.mxu0 0
        %1021 = vmatmul.mubr.bf16.gmra.mrb[0].mxu0 %v476
        %v1022 = vpop.f32.mrb[0].mxu0
        %v1023 = vadd.f32 0.0, %v1022
        %v1024 = vpop.f32.mrb[0].mxu0
        %v1025 = vpop.f32.mrb[0].mxu0
        %v1026 = vadd.f32 0.0, %v1025
        %v1027 = vpop.f32.mrb[0].mxu0
        %1028 = vmatprep.mubr.bf16.mxu0 0
        %1029 = vmatmul.mubr.bf16.gmra.mrb[0].mxu0 %v477
        %v1030 = vpop.f32.mrb[0].mxu0
        %v1031 = vadd.f32 0.0, %v1030
        %v1032 = vpop.f32.mrb[0].mxu0
        %v1033 = vpop.f32.mrb[0].mxu0
        %v1034 = vadd.f32 0.0, %v1033
        %v1035 = vpop.f32.mrb[0].mxu0
        %1036 = vdwg.mxu0
        %v1037 = vsel %vm647, %v1007, -inf
        %1038 = vmax.xlane.f32.xlu0 %v1037
        %v1039 = vpop.xlane.xlu0 %1038
        %v1040 = vsel %vm647, %v1010, -inf
        %1041 = vmax.xlane.f32.xlu0 %v1040
        %v1042 = vpop.xlane.xlu0 %1041
        %v1043 = vsel %vm647, %v1015, -inf
        %1044 = vmax.xlane.f32.xlu0 %v1043
        %v1045 = vpop.xlane.xlu0 %1044
        %v1046 = vsel %vm647, %v1018, -inf
        %1047 = vmax.xlane.f32.xlu0 %v1046
        %v1048 = vpop.xlane.xlu0 %1047
        %v1049 = vsel %vm647, %v1023, -inf
        %1050 = vmax.xlane.f32.xlu0 %v1049
        %v1051 = vpop.xlane.xlu0 %1050
        %v1052 = vsel %vm647, %v1026, -inf
        %1053 = vmax.xlane.f32.xlu0 %v1052
        %v1054 = vpop.xlane.xlu0 %1053
        %v1055 = vsel %vm647, %v1031, -inf
        %1056 = vmax.xlane.f32.xlu0 %v1055
        %v1057 = vpop.xlane.xlu0 %1056
        %v1058 = vsel %vm647, %v1034, -inf
        %1059 = vmax.xlane.f32.xlu0 %v1058
        %v1060 = vpop.xlane.xlu0 %1059
        %v1061 = vsub.f32 %v1007, %v1039
        %v1062 = vsub.f32 %v1010, %v1042
        %v1063 = vsub.f32 %v1015, %v1045
        %v1064 = vsub.f32 %v1018, %v1048
        %v1065 = vsub.f32 %v1023, %v1051
        %v1066 = vsub.f32 %v1026, %v1054
        %v1067 = vsub.f32 %v1031, %v1057
        %v1068 = vsub.f32 %v1034, %v1060
        %v1069 = vmul.f32 %v1061, 1.442695
        %v1070 = vpow.pop %v1069
        %v1071 = vmul.f32 %v1062, 1.442695
        %v1072 = vpow.pop %v1071
        %v1073 = vmul.f32 %v1063, 1.442695
        %v1074 = vpow.pop %v1073
        %v1075 = vmul.f32 %v1064, 1.442695
        %v1076 = vpow.pop %v1075
        %v1077 = vmul.f32 %v1065, 1.442695
        %v1078 = vpow.pop %v1077
        %v1079 = vmul.f32 %v1066, 1.442695
        %v1080 = vpow.pop %v1079
        %v1081 = vmul.f32 %v1067, 1.442695
        %v1082 = vpow.pop %v1081
        %v1083 = vmul.f32 %v1068, 1.442695
        %v1084 = vpow.pop %v1083
        %v1085 = vsel %vm647, %v1070, 0.0
        %1086 = vadd.xlane.f32.xlu0 %v1085
        %v1087 = vpop.xlane.xlu0 %1086
        %v1088 = vsel %vm647, %v1072, 0.0
        %1089 = vadd.xlane.f32.xlu0 %v1088
        %v1090 = vpop.xlane.xlu0 %1089
        %v1091 = vsel %vm647, %v1074, 0.0
        %1092 = vadd.xlane.f32.xlu0 %v1091
        %v1093 = vpop.xlane.xlu0 %1092
        %v1094 = vsel %vm647, %v1076, 0.0
        %1095 = vadd.xlane.f32.xlu0 %v1094
        %v1096 = vpop.xlane.xlu0 %1095
        %v1097 = vsel %vm647, %v1078, 0.0
        %1098 = vadd.xlane.f32.xlu0 %v1097
        %v1099 = vpop.xlane.xlu0 %1098
        %v1100 = vsel %vm647, %v1080, 0.0
        %1101 = vadd.xlane.f32.xlu0 %v1100
        %v1102 = vpop.xlane.xlu0 %1101
        %v1103 = vsel %vm647, %v1082, 0.0
        %1104 = vadd.xlane.f32.xlu0 %v1103
        %v1105 = vpop.xlane.xlu0 %1104
        %v1106 = vsel %vm647, %v1084, 0.0
        %1107 = vadd.xlane.f32.xlu0 %v1106
        %v1108 = vpop.xlane.xlu0 %1107
        %v1109 = vrcp.pop %v1087
        %v1110 = vrcp.pop %v1090
        %v1111 = vrcp.pop %v1093
        %v1112 = vrcp.pop %v1096
        %v1113 = vrcp.pop %v1099
        %v1114 = vrcp.pop %v1102
        %v1115 = vrcp.pop %v1105
        %v1116 = vrcp.pop %v1108
        %v1117 = vmul.f32 %v1070, %v1109
        %v1118 = vmul.f32 %v1072, %v1110
        %v1119 = vmul.f32 %v1074, %v1111
        %v1120 = vmul.f32 %v1076, %v1112
        %v1121 = vmul.f32 %v1078, %v1113
        %v1122 = vmul.f32 %v1080, %v1114
        %v1123 = vmul.f32 %v1082, %v1115
        %v1124 = vmul.f32 %v1084, %v1116
        %v1125 = vsel %vm647, %v1117, 0.0
        %v1126 = vsel %vm647, %v1118, 0.0
        %v1127 = vadd.f32 %v1125, %v1126
        %v1128 = vsel %vm647, %v1119, 0.0
        %v1129 = vadd.f32 %v1127, %v1128
        %v1130 = vsel %vm647, %v1120, 0.0
        %v1131 = vadd.f32 %v1129, %v1130
        %v1132 = vsel %vm647, %v1121, 0.0
        %v1133 = vadd.f32 %v1131, %v1132
        %v1134 = vsel %vm647, %v1122, 0.0
        %v1135 = vadd.f32 %v1133, %v1134
        %v1136 = vsel %vm647, %v1123, 0.0
        %v1137 = vadd.f32 %v1135, %v1136
        %v1138 = vsel %vm647, %v1124, 0.0
        %v1139 = vadd.f32 %v1137, %v1138
        %v1140 = vrot.slane %v1139, 4
        %v1141 = vadd.f32 %v1139, %v1140
        %v1142 = vrot.slane %v1141, 2
        %v1143 = vadd.f32 %v1141, %v1142
        %v1144 = vrot.slane %v1143, 1
        %v1145 = vadd.f32 %v1143, %v1144
        %v1146 = vadd.f32 %v1145, 1e-06
        %v1147 = vrcp.pop %v1146
        %v1148 = vmul.f32 %v1117, %v1147
        %v1149 = vmul.f32 %v1118, %v1147
        %v1150 = vmul.f32 %v1119, %v1147
        %v1151 = vmul.f32 %v1120, %v1147
        %v1152 = vmul.f32 %v1121, %v1147
        %v1153 = vmul.f32 %v1122, %v1147
        %v1154 = vmul.f32 %v1123, %v1147
        %v1155 = vmul.f32 %v1124, %v1147
        %v1156 = vpack.c.bf16 %v1149, %v1148
        %v1157 = vpack.c.bf16 %v1151, %v1150
        %v1158 = vpack.c.bf16 %v1153, %v1152
        %v1159 = vpack.c.bf16 %v1155, %v1154
        %1160 = vmatprep.subr.bf16.mxu0 0
        %1161 = vmatpush1.bf16.msra.mxu0 %v1156
        %1162 = vmatprep.subr.bf16.mxu0 0
        %1163 = vmatpush1.bf16.msra.mxu0 %v1157
        %1164 = vmatprep.subr.bf16.mxu0 0
        %1165 = vmatpush1.bf16.msra.mxu0 %v1158
        %1166 = vmatprep.subr.bf16.mxu0 0
        %1167 = vmatpush1.bf16.msra.mxu0 %v1159
        %1168 = vmatprep.subr.bf16.mxu0 0
        %1169 = vmatpush1.bf16.msra.mxu0 0
        %1170 = vmatprep.subr.bf16.mxu0 0
        %1171 = vmatpush1.bf16.msra.mxu0 0
        %1172 = vmatprep.subr.bf16.mxu0 0
        %1173 = vmatpush1.bf16.msra.mxu0 0
        %1174 = vmatprep.subr.bf16.mxu0 0
        %1175 = vmatpush1.bf16.msra.mxu0 0
        %1176 = vmatprep.subr.bf16.mxu0 0
        %1177 = vmatpush1.bf16.msra.mxu0 0
        %1178 = vmatprep.subr.bf16.mxu0 0
        %1179 = vmatpush1.bf16.msra.mxu0 0
        %1180 = vmatprep.subr.bf16.mxu0 0
        %1181 = vmatpush1.bf16.msra.mxu0 0
        %1182 = vmatprep.subr.bf16.mxu0 0
        %1183 = vmatpush1.bf16.msra.mxu0 0
        %1184 = vmatprep.subr.bf16.mxu0 0
        %1185 = vmatpush1.bf16.msra.mxu0 0
        %1186 = vmatprep.subr.bf16.mxu0 0
        %1187 = vmatpush1.bf16.msra.mxu0 0
        %1188 = vmatprep.subr.bf16.mxu0 0
        %1189 = vmatpush1.bf16.msra.mxu0 0
        %1190 = vmatprep.subr.bf16.mxu0 0
        %1191 = vmatpush1.bf16.msra.mxu0 0
        %1192 = vmatprep.mubr.bf16.mxu0 0
        %1193 = vmatmul.mubr.bf16.gmra.mrb[0].mxu0 %v773
        %v1194 = vpop.f32.mrb[0].mxu0
        %v1195 = vadd.f32 0.0, %v1194
        %v1196 = vpop.f32.mrb[0].mxu0
        %v1197 = vpop.f32.mrb[0].mxu0
        %v1198 = vadd.f32 0.0, %v1197
        %v1199 = vpop.f32.mrb[0].mxu0
        %1200 = vmatprep.mubr.bf16.mxu0 0
        %1201 = vmatmul.mubr.bf16.gmra.mrb[0].mxu0 %v776
        %v1202 = vpop.f32.mrb[0].mxu0
        %v1203 = vadd.f32 0.0, %v1202
        %v1204 = vpop.f32.mrb[0].mxu0
        %v1205 = vpop.f32.mrb[0].mxu0
        %v1206 = vadd.f32 0.0, %v1205
        %v1207 = vpop.f32.mrb[0].mxu0
        %1208 = vmatprep.mubr.bf16.mxu0 0
        %1209 = vmatmul.mubr.bf16.gmra.mrb[0].mxu0 %v779
        %v1210 = vpop.f32.mrb[0].mxu0
        %v1211 = vadd.f32 0.0, %v1210
        %v1212 = vpop.f32.mrb[0].mxu0
        %v1213 = vpop.f32.mrb[0].mxu0
        %v1214 = vadd.f32 0.0, %v1213
        %v1215 = vpop.f32.mrb[0].mxu0
        %1216 = vmatprep.mubr.bf16.mxu0 0
        %1217 = vmatmul.mubr.bf16.gmra.mrb[0].mxu0 %v782
        %v1218 = vpop.f32.mrb[0].mxu0
        %v1219 = vadd.f32 0.0, %v1218
        %v1220 = vpop.f32.mrb[0].mxu0
        %v1221 = vpop.f32.mrb[0].mxu0
        %v1222 = vadd.f32 0.0, %v1221
        %v1223 = vpop.f32.mrb[0].mxu0
        %1224 = vmatprep.mubr.bf16.mxu0 0
        %1225 = vmatmul.mubr.bf16.gmra.mrb[0].mxu0 %v785
        %v1226 = vpop.f32.mrb[0].mxu0
        %v1227 = vadd.f32 0.0, %v1226
        %v1228 = vpop.f32.mrb[0].mxu0
        %v1229 = vpop.f32.mrb[0].mxu0
        %v1230 = vadd.f32 0.0, %v1229
        %v1231 = vpop.f32.mrb[0].mxu0
        %1232 = vmatprep.mubr.bf16.mxu0 0
        %1233 = vmatmul.mubr.bf16.gmra.mrb[0].mxu0 %v788
        %v1234 = vpop.f32.mrb[0].mxu0
        %v1235 = vadd.f32 0.0, %v1234
        %v1236 = vpop.f32.mrb[0].mxu0
        %v1237 = vpop.f32.mrb[0].mxu0
        %v1238 = vadd.f32 0.0, %v1237
        %v1239 = vpop.f32.mrb[0].mxu0
        %1240 = vmatprep.mubr.bf16.mxu0 0
        %1241 = vmatmul.mubr.bf16.gmra.mrb[0].mxu0 %v791
        %v1242 = vpop.f32.mrb[0].mxu0
        %v1243 = vadd.f32 0.0, %v1242
        %v1244 = vpop.f32.mrb[0].mxu0
        %v1245 = vpop.f32.mrb[0].mxu0
        %v1246 = vadd.f32 0.0, %v1245
        %v1247 = vpop.f32.mrb[0].mxu0
        %1248 = vmatprep.mubr.bf16.mxu0 0
        %1249 = vmatmul.mubr.bf16.gmra.mrb[0].mxu0 %v794
        %v1250 = vpop.f32.mrb[0].mxu0
        %v1251 = vadd.f32 0.0, %v1250
        %v1252 = vpop.f32.mrb[0].mxu0
        %v1253 = vpop.f32.mrb[0].mxu0
        %v1254 = vadd.f32 0.0, %v1253
        %v1255 = vpop.f32.mrb[0].mxu0
        %1256 = vdwg.mxu0
        %v1257 = vmul.f32 %v1195, %v1195
        %v1258 = vmul.f32 %v1198, %v1198
        %v1259 = vmul.f32 %v1203, %v1203
        %v1260 = vmul.f32 %v1206, %v1206
        %v1261 = vmul.f32 %v1211, %v1211
        %v1262 = vmul.f32 %v1214, %v1214
        %v1263 = vmul.f32 %v1219, %v1219
        %v1264 = vmul.f32 %v1222, %v1222
        %v1265 = vmul.f32 %v1227, %v1227
        %v1266 = vmul.f32 %v1230, %v1230
        %v1267 = vmul.f32 %v1235, %v1235
        %v1268 = vmul.f32 %v1238, %v1238
        %v1269 = vmul.f32 %v1243, %v1243
        %v1270 = vmul.f32 %v1246, %v1246
        %v1271 = vmul.f32 %v1251, %v1251
        %v1272 = vmul.f32 %v1254, %v1254
        %v1273 = vsel %vm647, %v1257, 0.0
        %v1274 = vsel %vm647, %v1258, 0.0
        %v1275 = vadd.f32 %v1273, %v1274
        %v1276 = vsel %vm647, %v1259, 0.0
        %v1277 = vadd.f32 %v1275, %v1276
        %v1278 = vsel %vm647, %v1260, 0.0
        %v1279 = vadd.f32 %v1277, %v1278
        %v1280 = vsel %vm647, %v1261, 0.0
        %v1281 = vadd.f32 %v1279, %v1280
        %v1282 = vsel %vm647, %v1262, 0.0
        %v1283 = vadd.f32 %v1281, %v1282
        %v1284 = vsel %vm647, %v1263, 0.0
        %v1285 = vadd.f32 %v1283, %v1284
        %v1286 = vsel %vm647, %v1264, 0.0
        %v1287 = vadd.f32 %v1285, %v1286
        %v1288 = vsel %vm647, %v1265, 0.0
        %v1289 = vadd.f32 %v1287, %v1288
        %v1290 = vsel %vm647, %v1266, 0.0
        %v1291 = vadd.f32 %v1289, %v1290
        %v1292 = vsel %vm647, %v1267, 0.0
        %v1293 = vadd.f32 %v1291, %v1292
        %v1294 = vsel %vm647, %v1268, 0.0
        %v1295 = vadd.f32 %v1293, %v1294
        %v1296 = vsel %vm647, %v1269, 0.0
        %v1297 = vadd.f32 %v1295, %v1296
        %v1298 = vsel %vm647, %v1270, 0.0
        %v1299 = vadd.f32 %v1297, %v1298
        %v1300 = vsel %vm647, %v1271, 0.0
        %v1301 = vadd.f32 %v1299, %v1300
        %v1302 = vsel %vm647, %v1272, 0.0
        %v1303 = vadd.f32 %v1301, %v1302
        %v1304 = vrot.slane %v1303, 4
        %v1305 = vadd.f32 %v1303, %v1304
        %v1306 = vrot.slane %v1305, 2
        %v1307 = vadd.f32 %v1305, %v1306
        %v1308 = vrot.slane %v1307, 1
        %v1309 = vadd.f32 %v1307, %v1308
        %v1310 = vadd.f32 %v1309, 1e-12
        %v1311 = vrsqrt.pop %v1310
        %v1312 = vmul.f32 %v1195, %v1311
        %v1313 = vmul.f32 %v1198, %v1311
        %v1314 = vmul.f32 %v1203, %v1311
        %v1315 = vmul.f32 %v1206, %v1311
        %v1316 = vmul.f32 %v1211, %v1311
        %v1317 = vmul.f32 %v1214, %v1311
        %v1318 = vmul.f32 %v1219, %v1311
        %v1319 = vmul.f32 %v1222, %v1311
        %v1320 = vmul.f32 %v1227, %v1311
        %v1321 = vmul.f32 %v1230, %v1311
        %v1322 = vmul.f32 %v1235, %v1311
        %v1323 = vmul.f32 %v1238, %v1311
        %v1324 = vmul.f32 %v1243, %v1311
        %v1325 = vmul.f32 %v1246, %v1311
        %v1326 = vmul.f32 %v1251, %v1311
        %v1327 = vmul.f32 %v1254, %v1311
        %v1328 = vpack.c.bf16 %v1313, %v1312
        %v1329 = vpack.c.bf16 %v1315, %v1314
        %v1330 = vpack.c.bf16 %v1317, %v1316
        %v1331 = vpack.c.bf16 %v1319, %v1318
        %v1332 = vpack.c.bf16 %v1321, %v1320
        %v1333 = vpack.c.bf16 %v1323, %v1322
        %v1334 = vpack.c.bf16 %v1325, %v1324
        %v1335 = vpack.c.bf16 %v1327, %v1326
        %1336 = vmatprep.subr.bf16.mxu0 0
        %1337 = vmatpush1.bf16.msra.mxu0 %v1328
        %1338 = vmatprep.subr.bf16.mxu0 0
        %1339 = vmatpush1.bf16.msra.mxu0 %v1329
        %1340 = vmatprep.subr.bf16.mxu0 0
        %1341 = vmatpush1.bf16.msra.mxu0 %v1330
        %1342 = vmatprep.subr.bf16.mxu0 0
        %1343 = vmatpush1.bf16.msra.mxu0 %v1331
        %1344 = vmatprep.subr.bf16.mxu0 0
        %1345 = vmatpush1.bf16.msra.mxu0 %v1332
        %1346 = vmatprep.subr.bf16.mxu0 0
        %1347 = vmatpush1.bf16.msra.mxu0 %v1333
        %1348 = vmatprep.subr.bf16.mxu0 0
        %1349 = vmatpush1.bf16.msra.mxu0 %v1334
        %1350 = vmatprep.subr.bf16.mxu0 0
        %1351 = vmatpush1.bf16.msra.mxu0 %v1335
        %1352 = vmatprep.subr.bf16.mxu0 0
        %1353 = vmatpush1.bf16.msra.mxu0 0
        %1354 = vmatprep.subr.bf16.mxu0 0
        %1355 = vmatpush1.bf16.msra.mxu0 0
        %1356 = vmatprep.subr.bf16.mxu0 0
        %1357 = vmatpush1.bf16.msra.mxu0 0
        %1358 = vmatprep.subr.bf16.mxu0 0
        %1359 = vmatpush1.bf16.msra.mxu0 0
        %1360 = vmatprep.subr.bf16.mxu0 0
        %1361 = vmatpush1.bf16.msra.mxu0 0
        %1362 = vmatprep.subr.bf16.mxu0 0
        %1363 = vmatpush1.bf16.msra.mxu0 0
        %1364 = vmatprep.subr.bf16.mxu0 0
        %1365 = vmatpush1.bf16.msra.mxu0 0
        %1366 = vmatprep.subr.bf16.mxu0 0
        %1367 = vmatpush1.bf16.msra.mxu0 0
        %1368 = vmatprep.mubr.bf16.mxu0 0
        %1369 = vmatmul.mubr.bf16.gmra.mrb[0].mxu0 %v474
        %v1370 = vpop.f32.mrb[0].mxu0
        %v1371 = vadd.f32 0.0, %v1370
        %v1372 = vpop.f32.mrb[0].mxu0
        %v1373 = vpop.f32.mrb[0].mxu0
        %v1374 = vadd.f32 0.0, %v1373
        %v1375 = vpop.f32.mrb[0].mxu0
        %1376 = vmatprep.mubr.bf16.mxu0 0
        %1377 = vmatmul.mubr.bf16.gmra.mrb[0].mxu0 %v475
        %v1378 = vpop.f32.mrb[0].mxu0
        %v1379 = vadd.f32 0.0, %v1378
        %v1380 = vpop.f32.mrb[0].mxu0
        %v1381 = vpop.f32.mrb[0].mxu0
        %v1382 = vadd.f32 0.0, %v1381
        %v1383 = vpop.f32.mrb[0].mxu0
        %1384 = vmatprep.mubr.bf16.mxu0 0
        %1385 = vmatmul.mubr.bf16.gmra.mrb[0].mxu0 %v476
        %v1386 = vpop.f32.mrb[0].mxu0
        %v1387 = vadd.f32 0.0, %v1386
        %v1388 = vpop.f32.mrb[0].mxu0
        %v1389 = vpop.f32.mrb[0].mxu0
        %v1390 = vadd.f32 0.0, %v1389
        %v1391 = vpop.f32.mrb[0].mxu0
        %1392 = vmatprep.mubr.bf16.mxu0 0
        %1393 = vmatmul.mubr.bf16.gmra.mrb[0].mxu0 %v477
        %v1394 = vpop.f32.mrb[0].mxu0
        %v1395 = vadd.f32 0.0, %v1394
        %v1396 = vpop.f32.mrb[0].mxu0
        %v1397 = vpop.f32.mrb[0].mxu0
        %v1398 = vadd.f32 0.0, %v1397
        %v1399 = vpop.f32.mrb[0].mxu0
        %1400 = vdwg.mxu0
        %v1401 = vsel %vm647, %v1371, -inf
        %1402 = vmax.xlane.f32.xlu0 %v1401
        %v1403 = vpop.xlane.xlu0 %1402
        %v1404 = vsel %vm647, %v1374, -inf
        %1405 = vmax.xlane.f32.xlu0 %v1404
        %v1406 = vpop.xlane.xlu0 %1405
        %v1407 = vsel %vm647, %v1379, -inf
        %1408 = vmax.xlane.f32.xlu0 %v1407
        %v1409 = vpop.xlane.xlu0 %1408
        %v1410 = vsel %vm647, %v1382, -inf
        %1411 = vmax.xlane.f32.xlu0 %v1410
        %v1412 = vpop.xlane.xlu0 %1411
        %v1413 = vsel %vm647, %v1387, -inf
        %1414 = vmax.xlane.f32.xlu0 %v1413
        %v1415 = vpop.xlane.xlu0 %1414
        %v1416 = vsel %vm647, %v1390, -inf
        %1417 = vmax.xlane.f32.xlu0 %v1416
        %v1418 = vpop.xlane.xlu0 %1417
        %v1419 = vsel %vm647, %v1395, -inf
        %1420 = vmax.xlane.f32.xlu0 %v1419
        %v1421 = vpop.xlane.xlu0 %1420
        %v1422 = vsel %vm647, %v1398, -inf
        %1423 = vmax.xlane.f32.xlu0 %v1422
        %v1424 = vpop.xlane.xlu0 %1423
        %v1425 = vsub.f32 %v1371, %v1403
        %v1426 = vsub.f32 %v1374, %v1406
        %v1427 = vsub.f32 %v1379, %v1409
        %v1428 = vsub.f32 %v1382, %v1412
        %v1429 = vsub.f32 %v1387, %v1415
        %v1430 = vsub.f32 %v1390, %v1418
        %v1431 = vsub.f32 %v1395, %v1421
        %v1432 = vsub.f32 %v1398, %v1424
        %v1433 = vmul.f32 %v1425, 1.442695
        %v1434 = vpow.pop %v1433
        %v1435 = vmul.f32 %v1426, 1.442695
        %v1436 = vpow.pop %v1435
        %v1437 = vmul.f32 %v1427, 1.442695
        %v1438 = vpow.pop %v1437
        %v1439 = vmul.f32 %v1428, 1.442695
        %v1440 = vpow.pop %v1439
        %v1441 = vmul.f32 %v1429, 1.442695
        %v1442 = vpow.pop %v1441
        %v1443 = vmul.f32 %v1430, 1.442695
        %v1444 = vpow.pop %v1443
        %v1445 = vmul.f32 %v1431, 1.442695
        %v1446 = vpow.pop %v1445
        %v1447 = vmul.f32 %v1432, 1.442695
        %v1448 = vpow.pop %v1447
        %v1449 = vsel %vm647, %v1434, 0.0
        %1450 = vadd.xlane.f32.xlu0 %v1449
        %v1451 = vpop.xlane.xlu0 %1450
        %v1452 = vsel %vm647, %v1436, 0.0
        %1453 = vadd.xlane.f32.xlu0 %v1452
        %v1454 = vpop.xlane.xlu0 %1453
        %v1455 = vsel %vm647, %v1438, 0.0
        %1456 = vadd.xlane.f32.xlu0 %v1455
        %v1457 = vpop.xlane.xlu0 %1456
        %v1458 = vsel %vm647, %v1440, 0.0
        %1459 = vadd.xlane.f32.xlu0 %v1458
        %v1460 = vpop.xlane.xlu0 %1459
        %v1461 = vsel %vm647, %v1442, 0.0
        %1462 = vadd.xlane.f32.xlu0 %v1461
        %v1463 = vpop.xlane.xlu0 %1462
        %v1464 = vsel %vm647, %v1444, 0.0
        %1465 = vadd.xlane.f32.xlu0 %v1464
        %v1466 = vpop.xlane.xlu0 %1465
        %v1467 = vsel %vm647, %v1446, 0.0
        %1468 = vadd.xlane.f32.xlu0 %v1467
        %v1469 = vpop.xlane.xlu0 %1468
        %v1470 = vsel %vm647, %v1448, 0.0
        %1471 = vadd.xlane.f32.xlu0 %v1470
        %v1472 = vpop.xlane.xlu0 %1471
        %v1473 = vrcp.pop %v1451
        %v1474 = vrcp.pop %v1454
        %v1475 = vrcp.pop %v1457
        %v1476 = vrcp.pop %v1460
        %v1477 = vrcp.pop %v1463
        %v1478 = vrcp.pop %v1466
        %v1479 = vrcp.pop %v1469
        %v1480 = vrcp.pop %v1472
        %v1481 = vmul.f32 %v1434, %v1473
        %v1482 = vmul.f32 %v1436, %v1474
        %v1483 = vmul.f32 %v1438, %v1475
        %v1484 = vmul.f32 %v1440, %v1476
        %v1485 = vmul.f32 %v1442, %v1477
        %v1486 = vmul.f32 %v1444, %v1478
        %v1487 = vmul.f32 %v1446, %v1479
        %v1488 = vmul.f32 %v1448, %v1480
        %v1489 = vsel %vm647, %v1481, 0.0
        %v1490 = vsel %vm647, %v1482, 0.0
        %v1491 = vadd.f32 %v1489, %v1490
        %v1492 = vsel %vm647, %v1483, 0.0
        %v1493 = vadd.f32 %v1491, %v1492
        %v1494 = vsel %vm647, %v1484, 0.0
        %v1495 = vadd.f32 %v1493, %v1494
        %v1496 = vsel %vm647, %v1485, 0.0
        %v1497 = vadd.f32 %v1495, %v1496
        %v1498 = vsel %vm647, %v1486, 0.0
        %v1499 = vadd.f32 %v1497, %v1498
        %v1500 = vsel %vm647, %v1487, 0.0
        %v1501 = vadd.f32 %v1499, %v1500
        %v1502 = vsel %vm647, %v1488, 0.0
        %v1503 = vadd.f32 %v1501, %v1502
        %v1504 = vrot.slane %v1503, 4
        %v1505 = vadd.f32 %v1503, %v1504
        %v1506 = vrot.slane %v1505, 2
        %v1507 = vadd.f32 %v1505, %v1506
        %v1508 = vrot.slane %v1507, 1
        %v1509 = vadd.f32 %v1507, %v1508
        %v1510 = vadd.f32 %v1509, 1e-06
        %v1511 = vrcp.pop %v1510
        %v1512 = vmul.f32 %v1481, %v1511
        %v1513 = vmul.f32 %v1482, %v1511
        %v1514 = vmul.f32 %v1483, %v1511
        %v1515 = vmul.f32 %v1484, %v1511
        %v1516 = vmul.f32 %v1485, %v1511
        %v1517 = vmul.f32 %v1486, %v1511
        %v1518 = vmul.f32 %v1487, %v1511
        %v1519 = vmul.f32 %v1488, %v1511
        %v1520 = vpack.c.bf16 %v1513, %v1512
        %v1521 = vpack.c.bf16 %v1515, %v1514
        %v1522 = vpack.c.bf16 %v1517, %v1516
        %v1523 = vpack.c.bf16 %v1519, %v1518
        %1524 = vmatprep.subr.bf16.mxu0 0
        %1525 = vmatpush1.bf16.msra.mxu0 %v1520
        %1526 = vmatprep.subr.bf16.mxu0 0
        %1527 = vmatpush1.bf16.msra.mxu0 %v1521
        %1528 = vmatprep.subr.bf16.mxu0 0
        %1529 = vmatpush1.bf16.msra.mxu0 %v1522
        %1530 = vmatprep.subr.bf16.mxu0 0
        %1531 = vmatpush1.bf16.msra.mxu0 %v1523
        %1532 = vmatprep.subr.bf16.mxu0 0
        %1533 = vmatpush1.bf16.msra.mxu0 0
        %1534 = vmatprep.subr.bf16.mxu0 0
        %1535 = vmatpush1.bf16.msra.mxu0 0
        %1536 = vmatprep.subr.bf16.mxu0 0
        %1537 = vmatpush1.bf16.msra.mxu0 0
        %1538 = vmatprep.subr.bf16.mxu0 0
        %1539 = vmatpush1.bf16.msra.mxu0 0
        %1540 = vmatprep.subr.bf16.mxu0 0
        %1541 = vmatpush1.bf16.msra.mxu0 0
        %1542 = vmatprep.subr.bf16.mxu0 0
        %1543 = vmatpush1.bf16.msra.mxu0 0
        %1544 = vmatprep.subr.bf16.mxu0 0
        %1545 = vmatpush1.bf16.msra.mxu0 0
        %1546 = vmatprep.subr.bf16.mxu0 0
        %1547 = vmatpush1.bf16.msra.mxu0 0
        %1548 = vmatprep.subr.bf16.mxu0 0
        %1549 = vmatpush1.bf16.msra.mxu0 0
        %1550 = vmatprep.subr.bf16.mxu0 0
        %1551 = vmatpush1.bf16.msra.mxu0 0
        %1552 = vmatprep.subr.bf16.mxu0 0
        %1553 = vmatpush1.bf16.msra.mxu0 0
        %1554 = vmatprep.subr.bf16.mxu0 0
        %1555 = vmatpush1.bf16.msra.mxu0 0
        %1556 = vmatprep.mubr.bf16.mxu0 0
        %1557 = vmatmul.mubr.bf16.gmra.mrb[0].mxu0 %v773
        %v1558 = vpop.f32.mrb[0].mxu0
        %v1559 = vadd.f32 0.0, %v1558
        %v1560 = vpop.f32.mrb[0].mxu0
        %v1561 = vpop.f32.mrb[0].mxu0
        %v1562 = vadd.f32 0.0, %v1561
        %v1563 = vpop.f32.mrb[0].mxu0
        %1564 = vmatprep.mubr.bf16.mxu0 0
        %1565 = vmatmul.mubr.bf16.gmra.mrb[0].mxu0 %v776
        %v1566 = vpop.f32.mrb[0].mxu0
        %v1567 = vadd.f32 0.0, %v1566
        %v1568 = vpop.f32.mrb[0].mxu0
        %v1569 = vpop.f32.mrb[0].mxu0
        %v1570 = vadd.f32 0.0, %v1569
        %v1571 = vpop.f32.mrb[0].mxu0
        %1572 = vmatprep.mubr.bf16.mxu0 0
        %1573 = vmatmul.mubr.bf16.gmra.mrb[0].mxu0 %v779
        %v1574 = vpop.f32.mrb[0].mxu0
        %v1575 = vadd.f32 0.0, %v1574
        %v1576 = vpop.f32.mrb[0].mxu0
        %v1577 = vpop.f32.mrb[0].mxu0
        %v1578 = vadd.f32 0.0, %v1577
        %v1579 = vpop.f32.mrb[0].mxu0
        %1580 = vmatprep.mubr.bf16.mxu0 0
        %1581 = vmatmul.mubr.bf16.gmra.mrb[0].mxu0 %v782
        %v1582 = vpop.f32.mrb[0].mxu0
        %v1583 = vadd.f32 0.0, %v1582
        %v1584 = vpop.f32.mrb[0].mxu0
        %v1585 = vpop.f32.mrb[0].mxu0
        %v1586 = vadd.f32 0.0, %v1585
        %v1587 = vpop.f32.mrb[0].mxu0
        %1588 = vmatprep.mubr.bf16.mxu0 0
        %1589 = vmatmul.mubr.bf16.gmra.mrb[0].mxu0 %v785
        %v1590 = vpop.f32.mrb[0].mxu0
        %v1591 = vadd.f32 0.0, %v1590
        %v1592 = vpop.f32.mrb[0].mxu0
        %v1593 = vpop.f32.mrb[0].mxu0
        %v1594 = vadd.f32 0.0, %v1593
        %v1595 = vpop.f32.mrb[0].mxu0
        %1596 = vmatprep.mubr.bf16.mxu0 0
        %1597 = vmatmul.mubr.bf16.gmra.mrb[0].mxu0 %v788
        %v1598 = vpop.f32.mrb[0].mxu0
        %v1599 = vadd.f32 0.0, %v1598
        %v1600 = vpop.f32.mrb[0].mxu0
        %v1601 = vpop.f32.mrb[0].mxu0
        %v1602 = vadd.f32 0.0, %v1601
        %v1603 = vpop.f32.mrb[0].mxu0
        %1604 = vmatprep.mubr.bf16.mxu0 0
        %1605 = vmatmul.mubr.bf16.gmra.mrb[0].mxu0 %v791
        %v1606 = vpop.f32.mrb[0].mxu0
        %v1607 = vadd.f32 0.0, %v1606
        %v1608 = vpop.f32.mrb[0].mxu0
        %v1609 = vpop.f32.mrb[0].mxu0
        %v1610 = vadd.f32 0.0, %v1609
        %v1611 = vpop.f32.mrb[0].mxu0
        %1612 = vmatprep.mubr.bf16.mxu0 0
        %1613 = vmatmul.mubr.bf16.gmra.mrb[0].mxu0 %v794
        %v1614 = vpop.f32.mrb[0].mxu0
        %v1615 = vadd.f32 0.0, %v1614
        %v1616 = vpop.f32.mrb[0].mxu0
        %v1617 = vpop.f32.mrb[0].mxu0
        %v1618 = vadd.f32 0.0, %v1617
        %v1619 = vpop.f32.mrb[0].mxu0
        %1620 = vdwg.mxu0
        %v1621 = vmul.f32 %v1559, %v1559
        %v1622 = vmul.f32 %v1562, %v1562
        %v1623 = vmul.f32 %v1567, %v1567
        %v1624 = vmul.f32 %v1570, %v1570
        %v1625 = vmul.f32 %v1575, %v1575
        %v1626 = vmul.f32 %v1578, %v1578
        %v1627 = vmul.f32 %v1583, %v1583
        %v1628 = vmul.f32 %v1586, %v1586
        %v1629 = vmul.f32 %v1591, %v1591
        %v1630 = vmul.f32 %v1594, %v1594
        %v1631 = vmul.f32 %v1599, %v1599
        %v1632 = vmul.f32 %v1602, %v1602
        %v1633 = vmul.f32 %v1607, %v1607
        %v1634 = vmul.f32 %v1610, %v1610
        %v1635 = vmul.f32 %v1615, %v1615
        %v1636 = vmul.f32 %v1618, %v1618
        %v1637 = vsel %vm647, %v1621, 0.0
        %v1638 = vsel %vm647, %v1622, 0.0
        %v1639 = vadd.f32 %v1637, %v1638
        %v1640 = vsel %vm647, %v1623, 0.0
        %v1641 = vadd.f32 %v1639, %v1640
        %v1642 = vsel %vm647, %v1624, 0.0
        %v1643 = vadd.f32 %v1641, %v1642
        %v1644 = vsel %vm647, %v1625, 0.0
        %v1645 = vadd.f32 %v1643, %v1644
        %v1646 = vsel %vm647, %v1626, 0.0
        %v1647 = vadd.f32 %v1645, %v1646
        %v1648 = vsel %vm647, %v1627, 0.0
        %v1649 = vadd.f32 %v1647, %v1648
        %v1650 = vsel %vm647, %v1628, 0.0
        %v1651 = vadd.f32 %v1649, %v1650
        %v1652 = vsel %vm647, %v1629, 0.0
        %v1653 = vadd.f32 %v1651, %v1652
        %v1654 = vsel %vm647, %v1630, 0.0
        %v1655 = vadd.f32 %v1653, %v1654
        %v1656 = vsel %vm647, %v1631, 0.0
        %v1657 = vadd.f32 %v1655, %v1656
        %v1658 = vsel %vm647, %v1632, 0.0
        %v1659 = vadd.f32 %v1657, %v1658
        %v1660 = vsel %vm647, %v1633, 0.0
        %v1661 = vadd.f32 %v1659, %v1660
        %v1662 = vsel %vm647, %v1634, 0.0
        %v1663 = vadd.f32 %v1661, %v1662
        %v1664 = vsel %vm647, %v1635, 0.0
        %v1665 = vadd.f32 %v1663, %v1664
        %v1666 = vsel %vm647, %v1636, 0.0
        %v1667 = vadd.f32 %v1665, %v1666
        %v1668 = vrot.slane %v1667, 4
        %v1669 = vadd.f32 %v1667, %v1668
        %v1670 = vrot.slane %v1669, 2
        %v1671 = vadd.f32 %v1669, %v1670
        %v1672 = vrot.slane %v1671, 1
        %v1673 = vadd.f32 %v1671, %v1672
        %v1674 = vadd.f32 %v1673, 1e-12
        %v1675 = vrsqrt.pop %v1674
        %v1676 = vmul.f32 %v1559, %v1675
        %v1677 = vmul.f32 %v1562, %v1675
        %v1678 = vmul.f32 %v1567, %v1675
        %v1679 = vmul.f32 %v1570, %v1675
        %v1680 = vmul.f32 %v1575, %v1675
        %v1681 = vmul.f32 %v1578, %v1675
        %v1682 = vmul.f32 %v1583, %v1675
        %v1683 = vmul.f32 %v1586, %v1675
        %v1684 = vmul.f32 %v1591, %v1675
        %v1685 = vmul.f32 %v1594, %v1675
        %v1686 = vmul.f32 %v1599, %v1675
        %v1687 = vmul.f32 %v1602, %v1675
        %v1688 = vmul.f32 %v1607, %v1675
        %v1689 = vmul.f32 %v1610, %v1675
        %v1690 = vmul.f32 %v1615, %v1675
        %v1691 = vmul.f32 %v1618, %v1675
        %v1692 = vpack.c.bf16 %v1677, %v1676
        %v1693 = vpack.c.bf16 %v1679, %v1678
        %v1694 = vpack.c.bf16 %v1681, %v1680
        %v1695 = vpack.c.bf16 %v1683, %v1682
        %v1696 = vpack.c.bf16 %v1685, %v1684
        %v1697 = vpack.c.bf16 %v1687, %v1686
        %v1698 = vpack.c.bf16 %v1689, %v1688
        %v1699 = vpack.c.bf16 %v1691, %v1690
        %v1700 = vpack.c.bf16 %v1482, %v1481
        %v1701 = vpack.c.bf16 %v1484, %v1483
        %v1702 = vpack.c.bf16 %v1486, %v1485
        %v1703 = vpack.c.bf16 %v1488, %v1487
        %v1705 = vsel %vm647, %v1700, 0
        %v1708 = vsel %vm647, %v1701, 0
        %v1711 = vsel %vm647, %v1702, 0
        %v1714 = vsel %vm647, %v1703, 0
        %v1717 = vsel %vm647, %v1692, 0
        %v1720 = vsel %vm647, %v1693, 0
        %v1723 = vsel %vm647, %v1694, 0
        %v1726 = vsel %vm647, %v1695, 0
        %v1729 = vsel %vm647, %v1696, 0
        %v1732 = vsel %vm647, %v1697, 0
        %v1735 = vsel %vm647, %v1698, 0
        %v1738 = vsel %vm647, %v1699, 0
        %1740 = vmatprep.subr.bf16.mxu0 0
        %1741 = vmatpush1.bf16.xpose.msra.mxu0 %v1717
        %1742 = vmatprep.subr.bf16.mxu0 0
        %1743 = vmatpush1.bf16.xpose.msra.mxu0 %v1720
        %1744 = vmatprep.subr.bf16.mxu0 0
        %1745 = vmatpush1.bf16.xpose.msra.mxu0 %v1723
        %1746 = vmatprep.subr.bf16.mxu0 0
        %1747 = vmatpush1.bf16.xpose.msra.mxu0 %v1726
        %1748 = vmatprep.subr.bf16.mxu0 0
        %1749 = vmatpush1.bf16.xpose.msra.mxu0 %v1729
        %1750 = vmatprep.subr.bf16.mxu0 0
        %1751 = vmatpush1.bf16.xpose.msra.mxu0 %v1732
        %1752 = vmatprep.subr.bf16.mxu0 0
        %1753 = vmatpush1.bf16.xpose.msra.mxu0 %v1735
        %1754 = vmatprep.subr.bf16.mxu0 0
        %1755 = vmatpush1.bf16.xpose.msra.mxu0 %v1738
        %1756 = vmatprep.subr.bf16.mxu0 0
        %1757 = vmatpush1.bf16.xpose.msra.mxu0 0
        %1758 = vmatprep.subr.bf16.mxu0 0
        %1759 = vmatpush1.bf16.xpose.msra.mxu0 0
        %1760 = vmatprep.subr.bf16.mxu0 0
        %1761 = vmatpush1.bf16.xpose.msra.mxu0 0
        %1762 = vmatprep.subr.bf16.mxu0 0
        %1763 = vmatpush1.bf16.xpose.msra.mxu0 0
        %1764 = vmatprep.subr.bf16.mxu0 0
        %1765 = vmatpush1.bf16.xpose.msra.mxu0 0
        %1766 = vmatprep.subr.bf16.mxu0 0
        %1767 = vmatpush1.bf16.xpose.msra.mxu0 0
        %1768 = vmatprep.subr.bf16.mxu0 0
        %1769 = vmatpush1.bf16.xpose.msra.mxu0 0
        %1770 = vmatprep.subr.bf16.mxu0 0
        %1771 = vmatpush1.bf16.xpose.msra.mxu0 0
        %1772 = vmatprep.mubr.bf16.mxu0 0
        %1773 = vmatmul.mubr.bf16.gmra.mrb[0].mxu0 %v1705
        %v1774 = vpop.f32.mrb[0].mxu0
        %v1775 = vadd.f32 0.0, %v1774
        %v1776 = vpop.f32.mrb[0].mxu0
        %v1777 = vpop.f32.mrb[0].mxu0
        %v1778 = vadd.f32 0.0, %v1777
        %v1779 = vpop.f32.mrb[0].mxu0
        %1780 = vmatprep.mubr.bf16.mxu0 0
        %1781 = vmatmul.mubr.bf16.gmra.mrb[0].mxu0 %v1708
        %v1782 = vpop.f32.mrb[0].mxu0
        %v1783 = vadd.f32 0.0, %v1782
        %v1784 = vpop.f32.mrb[0].mxu0
        %v1785 = vpop.f32.mrb[0].mxu0
        %v1786 = vadd.f32 0.0, %v1785
        %v1787 = vpop.f32.mrb[0].mxu0
        %1788 = vmatprep.mubr.bf16.mxu0 0
        %1789 = vmatmul.mubr.bf16.gmra.mrb[0].mxu0 %v1711
        %v1790 = vpop.f32.mrb[0].mxu0
        %v1791 = vadd.f32 0.0, %v1790
        %v1792 = vpop.f32.mrb[0].mxu0
        %v1793 = vpop.f32.mrb[0].mxu0
        %v1794 = vadd.f32 0.0, %v1793
        %v1795 = vpop.f32.mrb[0].mxu0
        %1796 = vmatprep.mubr.bf16.mxu0 0
        %1797 = vmatmul.mubr.bf16.gmra.mrb[0].mxu0 %v1714
        %v1798 = vpop.f32.mrb[0].mxu0
        %v1799 = vadd.f32 0.0, %v1798
        %v1800 = vpop.f32.mrb[0].mxu0
        %v1801 = vpop.f32.mrb[0].mxu0
        %v1802 = vadd.f32 0.0, %v1801
        %v1803 = vpop.f32.mrb[0].mxu0
        %1804 = vdwg.mxu0
        %v1805 = vmax.f32 %v1775, 0.0
        %v1806 = vmax.f32 %v1778, 0.0
        %v1807 = vmax.f32 %v1783, 0.0
        %v1808 = vmax.f32 %v1786, 0.0
        %v1809 = vmax.f32 %v1791, 0.0
        %v1810 = vmax.f32 %v1794, 0.0
        %v1811 = vmax.f32 %v1799, 0.0
        %v1812 = vmax.f32 %v1802, 0.0
        %v1813 = vpack.c.bf16 %v1806, %v1805
        %v1814 = vpack.c.bf16 %v1808, %v1807
        %v1815 = vpack.c.bf16 %v1810, %v1809
        %v1816 = vpack.c.bf16 %v1812, %v1811
        %v1817 = vld [vmem:[#allocation5] sm:$0xf]
        %v1818 = vld [vmem:[#allocation5 + $0x4] sm:$0xf]
        %v1819 = vld [vmem:[#allocation5 + $0x8] sm:$0xf]
        %v1820 = vld [vmem:[#allocation5 + $0xc] sm:$0xf]
        %v1821 = vld [vmem:[#allocation5 + $0x10] sm:$0xf]
        %v1822 = vld [vmem:[#allocation5 + $0x14] sm:$0xf]
        %v1823 = vld [vmem:[#allocation5 + $0x18] sm:$0xf]
        %v1824 = vld [vmem:[#allocation5 + $0x1c] sm:$0xf]
        %v1825 = vld [vmem:[#allocation5 + $0x20] sm:$0xf]
        %v1826 = vld [vmem:[#allocation5 + $0x24] sm:$0xf]
        %v1827 = vld [vmem:[#allocation5 + $0x28] sm:$0xf]
        %v1828 = vld [vmem:[#allocation5 + $0x2c] sm:$0xf]
        %v1829 = vld [vmem:[#allocation5 + $0x30] sm:$0xf]
        %v1830 = vld [vmem:[#allocation5 + $0x34] sm:$0xf]
        %v1831 = vld [vmem:[#allocation5 + $0x38] sm:$0xf]
        %v1832 = vld [vmem:[#allocation5 + $0x3c] sm:$0xf]
        %v1833 = vld [vmem:[%s5] sm:$0x1]
        %v1835 = vlaneseq
        %v1836 = vshrl.u32 %v1835, 7
        %v1837 = vsub.s32 0, %v1836
        %v1838 = vrot.slane %v1833, %v1837
        %v1856 = vunpack.c.l.b16 %v1817
        %v1857 = vunpack.c.l.b16 %v1818
        %v1858 = vunpack.c.l.b16 %v1819
        %v1859 = vunpack.c.l.b16 %v1820
        %v1860 = vunpack.c.l.b16 %v1821
        %v1861 = vunpack.c.l.b16 %v1822
        %v1862 = vunpack.c.l.b16 %v1823
        %v1863 = vunpack.c.l.b16 %v1824
        %v1864 = vunpack.c.l.b16 %v1825
        %v1865 = vunpack.c.l.b16 %v1826
        %v1866 = vunpack.c.l.b16 %v1827
        %v1867 = vunpack.c.l.b16 %v1828
        %v1868 = vunpack.c.l.b16 %v1829
        %v1869 = vunpack.c.l.b16 %v1830
        %v1870 = vunpack.c.l.b16 %v1831
        %v1871 = vunpack.c.l.b16 %v1832
        %v1872 = vpack.c.b16 %v1857, %v1856
        %v1873 = vpack.c.b16 %v1859, %v1858
        %v1874 = vpack.c.b16 %v1861, %v1860
        %v1875 = vpack.c.b16 %v1863, %v1862
        %v1876 = vpack.c.b16 %v1865, %v1864
        %v1877 = vpack.c.b16 %v1867, %v1866
        %v1878 = vpack.c.b16 %v1869, %v1868
        %v1879 = vpack.c.b16 %v1871, %v1870
        %1888 = vmatprep.subr.bf16.mxu0 0
        %1889 = vmatpush1.bf16.msra.mxu0 %v1872
        %1890 = vmatprep.subr.bf16.mxu0 0
        %1891 = vmatpush1.bf16.msra.mxu0 %v1873
        %1892 = vmatprep.subr.bf16.mxu0 0
        %1893 = vmatpush1.bf16.msra.mxu0 %v1874
        %1894 = vmatprep.subr.bf16.mxu0 0
        %1895 = vmatpush1.bf16.msra.mxu0 %v1875
        %1896 = vmatprep.subr.bf16.mxu0 0
        %1897 = vmatpush1.bf16.msra.mxu0 %v1876
        %1898 = vmatprep.subr.bf16.mxu0 0
        %1899 = vmatpush1.bf16.msra.mxu0 %v1877
        %1900 = vmatprep.subr.bf16.mxu0 0
        %1901 = vmatpush1.bf16.msra.mxu0 %v1878
        %1902 = vmatprep.subr.bf16.mxu0 0
        %1903 = vmatpush1.bf16.msra.mxu0 %v1879
        %1904 = vmatprep.subr.bf16.mxu0 0
        %1905 = vmatpush1.bf16.msra.mxu0 0
        %1906 = vmatprep.subr.bf16.mxu0 0
        %1907 = vmatpush1.bf16.msra.mxu0 0
        %1908 = vmatprep.subr.bf16.mxu0 0
        %1909 = vmatpush1.bf16.msra.mxu0 0
        %1910 = vmatprep.subr.bf16.mxu0 0
        %1911 = vmatpush1.bf16.msra.mxu0 0
        %1912 = vmatprep.subr.bf16.mxu0 0
        %1913 = vmatpush1.bf16.msra.mxu0 0
        %1914 = vmatprep.subr.bf16.mxu0 0
        %1915 = vmatpush1.bf16.msra.mxu0 0
        %1916 = vmatprep.subr.bf16.mxu0 0
        %1917 = vmatpush1.bf16.msra.mxu0 0
        %1918 = vmatprep.subr.bf16.mxu0 0
        %1919 = vmatpush1.bf16.msra.mxu0 0
        %1920 = vmatprep.mubr.bf16.mxu0 0
        %1921 = vmatmul.mubr.bf16.gmra.mrb[0].mxu0 %v1813
        %v1922 = vpop.f32.mrb[0].mxu0
        %v1923 = vadd.f32 %v1838, %v1922
        %v1924 = vpop.f32.mrb[0].mxu0
        %v1925 = vpop.f32.mrb[0].mxu0
        %v1926 = vadd.f32 %v1838, %v1925
        %v1927 = vpop.f32.mrb[0].mxu0
        %1928 = vmatprep.mubr.bf16.mxu0 0
        %1929 = vmatmul.mubr.bf16.gmra.mrb[0].mxu0 %v1814
        %v1930 = vpop.f32.mrb[0].mxu0
        %v1931 = vadd.f32 %v1838, %v1930
        %v1932 = vpop.f32.mrb[0].mxu0
        %v1933 = vpop.f32.mrb[0].mxu0
        %v1934 = vadd.f32 %v1838, %v1933
        %v1935 = vpop.f32.mrb[0].mxu0
        %1936 = vmatprep.mubr.bf16.mxu0 0
        %1937 = vmatmul.mubr.bf16.gmra.mrb[0].mxu0 %v1815
        %v1938 = vpop.f32.mrb[0].mxu0
        %v1939 = vadd.f32 %v1838, %v1938
        %v1940 = vpop.f32.mrb[0].mxu0
        %v1941 = vpop.f32.mrb[0].mxu0
        %v1942 = vadd.f32 %v1838, %v1941
        %v1943 = vpop.f32.mrb[0].mxu0
        %1944 = vmatprep.mubr.bf16.mxu0 0
        %1945 = vmatmul.mubr.bf16.gmra.mrb[0].mxu0 %v1816
        %v1946 = vpop.f32.mrb[0].mxu0
        %v1947 = vadd.f32 %v1838, %v1946
        %v1948 = vpop.f32.mrb[0].mxu0
        %v1949 = vpop.f32.mrb[0].mxu0
        %v1950 = vadd.f32 %v1838, %v1949
        %v1951 = vpop.f32.mrb[0].mxu0
        %1952 = vdwg.mxu0
        %v1953 = vadd.f32 %v1923, %v326
        %v1954 = vadd.f32 %v1926, %v327
        %v1955 = vadd.f32 %v1931, %v328
        %v1956 = vadd.f32 %v1934, %v329
        %v1957 = vadd.f32 %v1939, %v330
        %v1958 = vadd.f32 %v1942, %v331
        %v1959 = vadd.f32 %v1947, %v332
        %v1960 = vadd.f32 %v1950, %v333
        %v1961 = vmax.f32 %v1953, 0.0
        %v1962 = vmax.f32 %v1954, 0.0
        %v1963 = vmax.f32 %v1955, 0.0
        %v1964 = vmax.f32 %v1956, 0.0
        %v1965 = vmax.f32 %v1957, 0.0
        %v1966 = vmax.f32 %v1958, 0.0
        %v1967 = vmax.f32 %v1959, 0.0
        %v1968 = vmax.f32 %v1960, 0.0
        %1969 = vst [vmem:[%s312] sm:$0xff] %v1961
        %1970 = vst [vmem:[%s312 + $0x8] sm:$0xff] %v1962
        %1971 = vst [vmem:[%s312 + $0x10] sm:$0xff] %v1963
        %1972 = vst [vmem:[%s312 + $0x18] sm:$0xff] %v1964
        %1973 = vst [vmem:[%s312 + $0x20] sm:$0xff] %v1965
        %1974 = vst [vmem:[%s312 + $0x28] sm:$0xff] %v1966
        %1975 = vst [vmem:[%s312 + $0x30] sm:$0xff] %v1967
        %1976 = vst [vmem:[%s312 + $0x38] sm:$0xff] %v1968
        %1977 = vst.msk [vmem:[%s324] sm:$0xff] %vm647, %v1676
        %1978 = vst.msk [vmem:[%s324 + $0x8] sm:$0xff] %vm647, %v1677
        %1979 = vst.msk [vmem:[%s324 + $0x10] sm:$0xff] %vm647, %v1678
        %1980 = vst.msk [vmem:[%s324 + $0x18] sm:$0xff] %vm647, %v1679
        %1981 = vst.msk [vmem:[%s324 + $0x20] sm:$0xff] %vm647, %v1680
        %1982 = vst.msk [vmem:[%s324 + $0x28] sm:$0xff] %vm647, %v1681
        %1983 = vst.msk [vmem:[%s324 + $0x30] sm:$0xff] %vm647, %v1682
        %1984 = vst.msk [vmem:[%s324 + $0x38] sm:$0xff] %vm647, %v1683
        %1985 = vst.msk [vmem:[%s324 + $0x40] sm:$0xff] %vm647, %v1684
        %1986 = vst.msk [vmem:[%s324 + $0x48] sm:$0xff] %vm647, %v1685
        %1987 = vst.msk [vmem:[%s324 + $0x50] sm:$0xff] %vm647, %v1686
        %1988 = vst.msk [vmem:[%s324 + $0x58] sm:$0xff] %vm647, %v1687
        %1989 = vst.msk [vmem:[%s324 + $0x60] sm:$0xff] %vm647, %v1688
        %1990 = vst.msk [vmem:[%s324 + $0x68] sm:$0xff] %vm647, %v1689
        %1991 = vst.msk [vmem:[%s324 + $0x70] sm:$0xff] %vm647, %v1690
        %1992 = vst.msk [vmem:[%s324 + $0x78] sm:$0xff] %vm647, %v1691
        %s1993 = sand.u32 %s165, 1
        %s1994 = scalar_lea.sflag [#allocation4], %s1993
        %s1995 = sand.u32 %s165, 1
        %s1996 = smul.addr %s1995, 64
        %s1997 = scalar_lea.vmem [#allocation7], %s1996
        %p1998 = scmp.lt.s32.totalorder %s26, 1
        %s1999 = scalar_select %p1998, %s26, 1
        %s2000 = smul.addr %s1999, 16
        %s2001 = smul.addr %s2000, 8
        %s2002 = scalar_lea.vmem %s7, %s2001
        // Predicated region
        $region53: #{tpu_custom_call.1} parent=43 // pred_check
          %p2003 = pneg %p175
        $region54: #{tpu_custom_call.1} parent=43 // pred_check_branch
          %2005 = sbr.rel (%p2003) target = $region56
        $region55: #{tpu_custom_call.1} parent=43 // pred_region
          %s2007 = ssub.s32 1024, 1024
          %2008 = vsyncadd %s1994, %s2007
          %s2009 = smul.addr %s26, 8
          %s2010 = smul.addr %s2009, 128
          %s2011 = scalar_lea.hbm %s6, %s2010
          %s2012 = sshll.u32 %s1997, 4
          %s2013 = int_to_ptr.vmem [resolvable:$true] %s2012
          %2018 = dma.vmem_to_hbm [thread:$0]  %s2013, 1024, %s2011, %s1994, 128, 128, 8
        $region56: #{tpu_custom_call.1} parent=43 // pred_fallthru
          _
        // Predicated region
        $region57: #{tpu_custom_call.1} parent=43 // pred_check
          %p2019 = pneg %p201
        $region58: #{tpu_custom_call.1} parent=43 // pred_check_branch
          %2021 = sbr.rel (%p2019) target = $region60
        $region59: #{tpu_custom_call.1} parent=43 // pred_region
          _
        $region60: #{tpu_custom_call.1} parent=43 // pred_fallthru
          _
      $region44: #{tpu_custom_call.1} parent=5 // pred_fallthru
        _
      %p2022 = scmp.le.s32.totalorder 2, %s21
      // Predicated region
      $region61: #{tpu_custom_call.1} parent=5 // pred_check
        %p2023 = pneg %p2022
      $region62: #{tpu_custom_call.1} parent=5 // pred_check_branch
        %2025 = sbr.rel (%p2023) target = $region64
      $region63: #{tpu_custom_call.1} parent=5 // pred_region
        %s2026 = ssub.s32 %s21, 2
        // Predicated region
        $region65: #{tpu_custom_call.1} parent=63 // pred_check
          %p2027 = pneg %p181
        $region66: #{tpu_custom_call.1} parent=63 // pred_check_branch
          %2029 = sbr.rel (%p2027) target = $region68
        $region67: #{tpu_custom_call.1} parent=63 // pred_region
          %s2030 = sand.u32 %s166, 1
          %s2031 = scalar_lea.sflag [#allocation4], %s2030
          %s2032 = sand.u32 %s166, 1
          %s2033 = smul.addr %s2032, 64
          %s2034 = scalar_lea.vmem [#allocation7], %s2033
          %2035 = dma.done %s2031, 1024
        $region68: #{tpu_custom_call.1} parent=63 // pred_fallthru
          _
        // Predicated region
        $region69: #{tpu_custom_call.1} parent=63 // pred_check
          %p2036 = pneg %p207
        $region70: #{tpu_custom_call.1} parent=63 // pred_check_branch
          %2038 = sbr.rel (%p2036) target = $region72
        $region71: #{tpu_custom_call.1} parent=63 // pred_region
          %p2039 = scmp.lt.s32.totalorder %s27, 1
          %s2040 = scalar_select %p2039, %s27, 1
          %s2041 = smul.addr %s2040, 16
          %s2042 = smul.addr %s2041, 8
          %s2043 = scalar_lea.vmem %s7, %s2042
        $region72: #{tpu_custom_call.1} parent=63 // pred_fallthru
          _
      $region64: #{tpu_custom_call.1} parent=5 // pred_fallthru
        _
    $region6: #{tpu_custom_call.1} parent=1 // loop_footer
      %s25 = sadd.s32 1, %s21
    $region7: #{tpu_custom_call.1} parent=1 // loop_footer_branch
      %20 = sbr.rel target = $region3
    $region8: #{tpu_custom_call.1} parent=1 // loop_exit
      _
    %2044 = vsyncpa [#allocation3], 1
    %s2045 = scalar_lea.sflag [#allocation3], 1
    %2046 = vsyncpa %s2045, 1
    %2047 = vsyncpa [#allocation6], 1
    %2048 = vsyncpa [#allocation4], 1
    %s2049 = scalar_lea.sflag [#allocation4], 1
    %2050 = vsyncpa %s2049, 1

</llo_original>
